<compile_context>
chip_gen: v7x
topology: tpu7x:2x2x1
jax: 0.10.0
libtpu: 0.0.40
codegen_flags: <defaults>
</compile_context>

<pallas_src>
import math

import jax
import jax.numpy as jnp
from jax.experimental import pallas as pl
from jax.experimental.pallas import tpu as pltpu

# ---- model config (small, consistent with the module) ----
B = 2          # batch
T = 8          # sequence length (== block_size)
C = 32         # n_embd
N_HEAD = 4
HEAD_DIM = C // N_HEAD
LN_EPS = 1e-5
NEG_INF = -1e30


def _layernorm(h, gamma, beta):
    mu = jnp.mean(h, axis=-1, keepdims=True)
    var = jnp.mean((h - mu) ** 2, axis=-1, keepdims=True)
    return (h - mu) * jax.lax.rsqrt(var + LN_EPS) * gamma + beta


def _gelu_tanh(x):
    # matches torch.nn.GELU(approximate='tanh')
    c = math.sqrt(2.0 / math.pi)
    return 0.5 * x * (1.0 + jnp.tanh(c * (x + 0.044715 * x * x * x)))


def block_kernel(x_ref,      # (T, C)   f32   activations for one batch element
                 vp_ref,     # (9, C)   f32   [g1,b1,g2,b2,bo,bpr,bq,bk,bv] (bq pre-scaled)
                 wqkv_ref,   # (C, 3C)  bf16  c_attn weight, Q columns pre-scaled
                 wo_ref,     # (C, C)   bf16  attn c_proj weight
                 wfc_ref,    # (C, 4C)  bf16
                 bfc_ref,    # (1, 4C)  f32
                 wpr_ref,    # (4C, C)  bf16
                 out_ref,    # (T, C)   f32
                 y_sc):      # (T, C)   f32 VMEM scratch: lane-dense attention output
    Tlen, Cdim = x_ref.shape
    H = N_HEAD
    D = Cdim // H
    bf16 = jnp.bfloat16
    f32 = jnp.float32

    x = x_ref[...]                                   # (T, C) f32

    g1 = vp_ref[0:1, :]
    b1 = vp_ref[1:2, :]
    g2 = vp_ref[2:3, :]
    b2 = vp_ref[3:4, :]
    bo = vp_ref[4:5, :]
    bpr = vp_ref[5:6, :]
    bq = vp_ref[6:7, :]
    bk = vp_ref[7:8, :]
    bv = vp_ref[8:9, :]

    # ---------------- attention branch ----------------
    h = _layernorm(x, g1, b1)                        # ln_1, f32 stats

    # lane-dense QKV projection: (T,C)@(C,3C), bf16 operands, f32 accumulate
    qkv = jax.lax.dot_general(h.astype(bf16), wqkv_ref[...],
                              (((1,), (0,)), ((), ())),
                              preferred_element_type=f32)        # (T, 3C)
    q = qkv[:, 0:Cdim] + bq                          # Q already scaled by 1/sqrt(D)
    k = qkv[:, Cdim:2 * Cdim] + bk
    v = qkv[:, 2 * Cdim:3 * Cdim] + bv

    # causal mask built in-kernel (no dense mask input / DMA)
    row = jax.lax.broadcasted_iota(jnp.int32, (Tlen, Tlen), 0)
    col = jax.lax.broadcasted_iota(jnp.int32, (Tlen, Tlen), 1)
    causal = row >= col                              # (T, T) bool

    # per-head (T,T) score / softmax / PV; head outputs land lane-dense in y_sc
    for hh in range(H):
        lo, hi = hh * D, (hh + 1) * D
        qh = q[:, lo:hi].astype(bf16)                # (T, D)
        kh = k[:, lo:hi].astype(bf16)
        vh = v[:, lo:hi].astype(bf16)

        att = jax.lax.dot_general(qh, kh, (((1,), (1,)), ((), ())),
                                  preferred_element_type=f32)    # (T, T) = q @ k^T
        att = jnp.where(causal, att, NEG_INF)
        att = att - jnp.max(att, axis=-1, keepdims=True)         # f32 softmax
        p = jnp.exp(att)
        p = p * pl.reciprocal(jnp.sum(p, axis=-1, keepdims=True), approx=True)

        yh = jnp.dot(p.astype(bf16), vh, preferred_element_type=f32)   # (T, D)
        y_sc[:, lo:hi] = yh                          # assemble lane-dense (T, C)

    # single lane-dense output projection (T,C)@(C,C)
    att_out = jnp.dot(y_sc[...].astype(bf16), wo_ref[...],
                      preferred_element_type=f32) + bo
    x1 = x + att_out                                 # residual 1

    # ---------------- MLP branch ----------------
    h2 = _layernorm(x1, g2, b2)                      # ln_2, f32
    m = jnp.dot(h2.astype(bf16), wfc_ref[...],
                preferred_element_type=f32) + bfc_ref[...]
    m = _gelu_tanh(m)                                # f32 EUP/VPU math
    m = jnp.dot(m.astype(bf16), wpr_ref[...],
                preferred_element_type=f32) + bpr

    out_ref[...] = x1 + m                            # residual 2


def _pack_params(params, n_head):
    """Re-layout PyTorch-style params for the fused kernel (pure JAX, wrapper-side)."""
    (g1, b1, wqkv, bqkv, wo, bo, g2, b2, wfc, bfc, wpr, bpr) = params
    Cdim = g1.shape[-1]
    D = Cdim // n_head
    scale = 1.0 / math.sqrt(D)
    bf16 = jnp.bfloat16

    # fold 1/sqrt(D) into the Q columns of c_attn (weight and bias)
    wqkv_s = jnp.concatenate([wqkv[:, :Cdim] * scale, wqkv[:, Cdim:]], axis=1)
    bq = bqkv[:, :Cdim] * scale
    bk = bqkv[:, Cdim:2 * Cdim]
    bv = bqkv[:, 2 * Cdim:]

    # small-param slab: (9, C) f32
    vp = jnp.concatenate([g1, b1, g2, b2, bo, bpr, bq, bk, bv], axis=0)

    return (vp,
            wqkv_s.astype(bf16),
            wo.astype(bf16),
            wfc.astype(bf16),
            bfc,                       # f32, added to f32 accumulator
            wpr.astype(bf16))


def gpt_block_forward(x, params):
    Bsz, Tlen, Cdim = x.shape
    vp, wqkv_bf, wo_bf, wfc_bf, bfc, wpr_bf = _pack_params(params, N_HEAD)

    const2d = lambda shape: pl.BlockSpec(shape, lambda b: (0, 0))

    out = pl.pallas_call(
        block_kernel,
        out_shape=jax.ShapeDtypeStruct((Bsz, Tlen, Cdim), x.dtype),
        grid=(Bsz,),
        in_specs=[
            pl.BlockSpec((None, Tlen, Cdim), lambda b: (b, 0, 0)),   # x: one batch / step
            const2d(vp.shape),                                       # weights: resident
            const2d(wqkv_bf.shape),
            const2d(wo_bf.shape),
            const2d(wfc_bf.shape),
            const2d(bfc.shape),
            const2d(wpr_bf.shape),
        ],
        out_specs=pl.BlockSpec((None, Tlen, Cdim), lambda b: (b, 0, 0)),
        scratch_shapes=[pltpu.VMEM((Tlen, Cdim), jnp.float32)],
        compiler_params=pltpu.CompilerParams(
            dimension_semantics=("parallel",)),                      # megacore on v7x
    )(x, vp, wqkv_bf, wo_bf, wfc_bf, bfc, wpr_bf)

    return out


def init_params(key):
    ks = jax.random.split(key, 6)
    std = 0.02
    f32 = jnp.float32
    # LayerNorm params (stored (1, C) so they broadcast over rows)
    g1 = jnp.ones((1, C), f32)
    b1 = jnp.zeros((1, C), f32)
    g2 = jnp.ones((1, C), f32)
    b2 = jnp.zeros((1, C), f32)
    # Attention: c_attn (C -> 3C), c_proj (C -> C); weights stored (in, out)
    wqkv = std * jax.random.normal(ks[0], (C, 3 * C), f32)
    bqkv = std * jax.random.normal(ks[1], (1, 3 * C), f32)
    wo = std * jax.random.normal(ks[2], (C, C), f32)
    bo = jnp.zeros((1, C), f32)
    # MLP: c_fc (C -> 4C), c_proj (4C -> C)
    wfc = std * jax.random.normal(ks[3], (C, 4 * C), f32)
    bfc = std * jax.random.normal(ks[4], (1, 4 * C), f32)
    wpr = std * jax.random.normal(ks[5], (4 * C, C), f32)
    bpr = jnp.zeros((1, C), f32)
    return (g1, b1, wqkv, bqkv, wo, bo, g2, b2, wfc, bfc, wpr, bpr)


def reference_forward(x, params):
    # Pure-JAX f32 reference of the same math (for sanity checking).
    (g1, b1, wqkv, bqkv, wo, bo, g2, b2, wfc, bfc, wpr, bpr) = params

    def ln(h, g, b):
        mu = jnp.mean(h, axis=-1, keepdims=True)
        var = jnp.mean((h - mu) ** 2, axis=-1, keepdims=True)
        return (h - mu) / jnp.sqrt(var + LN_EPS) * g + b

    h = ln(x, g1, b1)
    qkv = h @ wqkv + bqkv
    q, k, v = jnp.split(qkv, 3, axis=-1)
    reshape_heads = lambda t: t.reshape(B, T, N_HEAD, HEAD_DIM).transpose(0, 2, 1, 3)
    q, k, v = map(reshape_heads, (q, k, v))
    att = (q @ jnp.swapaxes(k, -1, -2)) / math.sqrt(HEAD_DIM)
    mask = jnp.tril(jnp.ones((T, T), bool))
    att = jnp.where(mask, att, -jnp.inf)
    att = jax.nn.softmax(att, axis=-1)
    y = (att @ v).transpose(0, 2, 1, 3).reshape(B, T, C)
    y = y @ wo + bo
    x1 = x + y
    h2 = ln(x1, g2, b2)
    m = h2 @ wfc + bfc
    m = _gelu_tanh(m)
    m = m @ wpr + bpr
    return x1 + m


if __name__ == "__main__":
    key = jax.random.PRNGKey(0)
    kx, kp = jax.random.split(key)
    x = jax.random.normal(kx, (B, T, C), jnp.float32)
    params = init_params(kp)

    fwd = jax.jit(gpt_block_forward)
    out = fwd(x, params)
    out = jax.block_until_ready(out)

    ref = reference_forward(x, params)
    assert out.shape == (B, T, C)
    assert jnp.all(jnp.isfinite(out))
    # tolerance covers bf16 MXU operands + approximate (EUP) reciprocal in the softmax
    assert jnp.allclose(out, ref, atol=1e-2, rtol=1e-2)
    print("KERNEL_OK")
</pallas_src>

<mosaic_0001>
module attributes {stable_mosaic.version = 11 : i64} {
  func.func @block_kernel(%arg0: i32, %arg1: memref<1x8x32xf32, #tpu.memory_space<vmem>>, %arg2: memref<9x32xf32, #tpu.memory_space<vmem>>, %arg3: memref<32x96xbf16, #tpu.memory_space<vmem>>, %arg4: memref<32x32xbf16, #tpu.memory_space<vmem>>, %arg5: memref<32x128xbf16, #tpu.memory_space<vmem>>, %arg6: memref<1x128xf32, #tpu.memory_space<vmem>>, %arg7: memref<128x32xbf16, #tpu.memory_space<vmem>>, %arg8: memref<1x8x32xf32, #tpu.memory_space<vmem>>, %arg9: memref<8x32xf32, #tpu.memory_space<vmem>>) attributes {dimension_semantics = [#tpu.dimension_semantics<parallel>], iteration_bounds = array<i64: 2>, scalar_prefetch = 0 : i64, scratch_operands = 1 : i64, tpu.core_type = #tpu.core_type<tc>, window_params = [{transform_indices = @transform_0, window_bounds = array<i64: 1, 8, 32>}, {pipeline_mode = #tpu.pipeline_mode<synchronous>, transform_indices = @transform_1, window_bounds = array<i64: 9, 32>}, {pipeline_mode = #tpu.pipeline_mode<synchronous>, transform_indices = @transform_2, window_bounds = array<i64: 32, 96>}, {pipeline_mode = #tpu.pipeline_mode<synchronous>, transform_indices = @transform_3, window_bounds = array<i64: 32, 32>}, {pipeline_mode = #tpu.pipeline_mode<synchronous>, transform_indices = @transform_4, window_bounds = array<i64: 32, 128>}, {pipeline_mode = #tpu.pipeline_mode<synchronous>, transform_indices = @transform_5, window_bounds = array<i64: 1, 128>}, {pipeline_mode = #tpu.pipeline_mode<synchronous>, transform_indices = @transform_6, window_bounds = array<i64: 128, 32>}, {transform_indices = @transform_7, window_bounds = array<i64: 1, 8, 32>}]} {
    %c0 = arith.constant 0 : index
    %c0_0 = arith.constant 0 : index
    %c0_1 = arith.constant 0 : index
    %0 = vector.load %arg1[%c0, %c0_0, %c0_1] : memref<1x8x32xf32, #tpu.memory_space<vmem>>, vector<1x8x32xf32>
    %1 = vector.shape_cast %0 : vector<1x8x32xf32> to vector<8x32xf32>
    %c0_2 = arith.constant 0 : index
    %c0_3 = arith.constant 0 : index
    %2 = vector.load %arg2[%c0_2, %c0_3] : memref<9x32xf32, #tpu.memory_space<vmem>>, vector<1x32xf32>
    %c1 = arith.constant 1 : index
    %c0_4 = arith.constant 0 : index
    %3 = vector.load %arg2[%c1, %c0_4] : memref<9x32xf32, #tpu.memory_space<vmem>>, vector<1x32xf32>
    %c2 = arith.constant 2 : index
    %c0_5 = arith.constant 0 : index
    %4 = vector.load %arg2[%c2, %c0_5] : memref<9x32xf32, #tpu.memory_space<vmem>>, vector<1x32xf32>
    %c3 = arith.constant 3 : index
    %c0_6 = arith.constant 0 : index
    %5 = vector.load %arg2[%c3, %c0_6] : memref<9x32xf32, #tpu.memory_space<vmem>>, vector<1x32xf32>
    %c4 = arith.constant 4 : index
    %c0_7 = arith.constant 0 : index
    %6 = vector.load %arg2[%c4, %c0_7] : memref<9x32xf32, #tpu.memory_space<vmem>>, vector<1x32xf32>
    %c5 = arith.constant 5 : index
    %c0_8 = arith.constant 0 : index
    %7 = vector.load %arg2[%c5, %c0_8] : memref<9x32xf32, #tpu.memory_space<vmem>>, vector<1x32xf32>
    %c6 = arith.constant 6 : index
    %c0_9 = arith.constant 0 : index
    %8 = vector.load %arg2[%c6, %c0_9] : memref<9x32xf32, #tpu.memory_space<vmem>>, vector<1x32xf32>
    %c7 = arith.constant 7 : index
    %c0_10 = arith.constant 0 : index
    %9 = vector.load %arg2[%c7, %c0_10] : memref<9x32xf32, #tpu.memory_space<vmem>>, vector<1x32xf32>
    %c8 = arith.constant 8 : index
    %c0_11 = arith.constant 0 : index
    %10 = vector.load %arg2[%c8, %c0_11] : memref<9x32xf32, #tpu.memory_space<vmem>>, vector<1x32xf32>
    %cst = arith.constant dense<0.000000e+00> : vector<8xf32>
    %11 = vector.multi_reduction <add>, %1, %cst [1] : vector<8x32xf32> to vector<8xf32>
    %12 = vector.shape_cast %11 : vector<8xf32> to vector<8x1xf32>
    %cst_12 = arith.constant 3.200000e+01 : f32
    %13 = vector.broadcast %cst_12 : f32 to vector<8x1xf32>
    %14 = arith.divf %12, %13 : vector<8x1xf32>
    %15 = vector.broadcast %14 : vector<8x1xf32> to vector<8x32xf32>
    %16 = arith.subf %1, %15 : vector<8x32xf32>
    %17 = arith.mulf %16, %16 : vector<8x32xf32>
    %cst_13 = arith.constant dense<0.000000e+00> : vector<8xf32>
    %18 = vector.multi_reduction <add>, %17, %cst_13 [1] : vector<8x32xf32> to vector<8xf32>
    %19 = vector.shape_cast %18 : vector<8xf32> to vector<8x1xf32>
    %cst_14 = arith.constant 3.200000e+01 : f32
    %20 = vector.broadcast %cst_14 : f32 to vector<8x1xf32>
    %21 = arith.divf %19, %20 : vector<8x1xf32>
    %22 = vector.broadcast %14 : vector<8x1xf32> to vector<8x32xf32>
    %23 = arith.subf %1, %22 : vector<8x32xf32>
    %cst_15 = arith.constant 9.99999974E-6 : f32
    %24 = vector.broadcast %cst_15 : f32 to vector<8x1xf32>
    %25 = arith.addf %21, %24 : vector<8x1xf32>
    %26 = math.rsqrt %25 : vector<8x1xf32>
    %27 = vector.broadcast %26 : vector<8x1xf32> to vector<8x32xf32>
    %28 = arith.mulf %23, %27 : vector<8x32xf32>
    %29 = vector.broadcast %2 : vector<1x32xf32> to vector<8x32xf32>
    %30 = arith.mulf %28, %29 : vector<8x32xf32>
    %31 = vector.broadcast %3 : vector<1x32xf32> to vector<8x32xf32>
    %32 = arith.addf %30, %31 : vector<8x32xf32>
    %33 = arith.truncf %32 : vector<8x32xf32> to vector<8x32xbf16>
    %c0_16 = arith.constant 0 : index
    %c0_17 = arith.constant 0 : index
    %34 = vector.load %arg3[%c0_16, %c0_17] : memref<32x96xbf16, #tpu.memory_space<vmem>>, vector<32x96xbf16>
    %cst_18 = arith.constant dense<0.000000e+00> : vector<8x96xf32>
    %35 = tpu.matmul %33, %34, %cst_18 {dimension_numbers = #tpu.dot_dimension_numbers<[1], [0], [0], [1], [0, 0, 1, 1], [], []>} : vector<8x32xbf16>, vector<32x96xbf16>, vector<8x96xf32> -> vector<8x96xf32>
    %36 = vector.extract_strided_slice %35 {offsets = [0, 0], sizes = [8, 32], strides = [1, 1]} : vector<8x96xf32> to vector<8x32xf32>
    %37 = vector.broadcast %8 : vector<1x32xf32> to vector<8x32xf32>
    %38 = arith.addf %36, %37 : vector<8x32xf32>
    %39 = vector.extract_strided_slice %35 {offsets = [0, 32], sizes = [8, 32], strides = [1, 1]} : vector<8x96xf32> to vector<8x32xf32>
    %40 = vector.broadcast %9 : vector<1x32xf32> to vector<8x32xf32>
    %41 = arith.addf %39, %40 : vector<8x32xf32>
    %42 = vector.extract_strided_slice %35 {offsets = [0, 64], sizes = [8, 32], strides = [1, 1]} : vector<8x96xf32> to vector<8x32xf32>
    %43 = vector.broadcast %10 : vector<1x32xf32> to vector<8x32xf32>
    %44 = arith.addf %42, %43 : vector<8x32xf32>
    %45 = tpu.iota {dimensions = array<i32: 0>} : vector<8x8xi32>
    %46 = tpu.iota {dimensions = array<i32: 1>} : vector<8x8xi32>
    %47 = arith.cmpi sge, %45, %46 : vector<8x8xi32>
    %48 = vector.extract_strided_slice %38 {offsets = [0, 0], sizes = [8, 8], strides = [1, 1]} : vector<8x32xf32> to vector<8x8xf32>
    %49 = arith.truncf %48 : vector<8x8xf32> to vector<8x8xbf16>
    %50 = vector.extract_strided_slice %41 {offsets = [0, 0], sizes = [8, 8], strides = [1, 1]} : vector<8x32xf32> to vector<8x8xf32>
    %51 = arith.truncf %50 : vector<8x8xf32> to vector<8x8xbf16>
    %52 = vector.extract_strided_slice %44 {offsets = [0, 0], sizes = [8, 8], strides = [1, 1]} : vector<8x32xf32> to vector<8x8xf32>
    %53 = arith.truncf %52 : vector<8x8xf32> to vector<8x8xbf16>
    %cst_19 = arith.constant dense<0.000000e+00> : vector<8x8xf32>
    %54 = tpu.matmul %49, %51, %cst_19 {dimension_numbers = #tpu.dot_dimension_numbers<[1], [1], [0], [0], [0, 0, 1, 0], [], []>} : vector<8x8xbf16>, vector<8x8xbf16>, vector<8x8xf32> -> vector<8x8xf32>
    %cst_20 = arith.constant -1.000000e+30 : f32
    %55 = vector.broadcast %cst_20 : f32 to vector<8x8xf32>
    %56 = arith.select %47, %54, %55 : vector<8x8xi1>, vector<8x8xf32>
    %cst_21 = arith.constant dense<0xFF800000> : vector<8xf32>
    %57 = vector.multi_reduction <maximumf>, %56, %cst_21 [1] : vector<8x8xf32> to vector<8xf32>
    %58 = vector.shape_cast %57 : vector<8xf32> to vector<8x1xf32>
    %59 = vector.broadcast %58 : vector<8x1xf32> to vector<8x8xf32>
    %60 = arith.subf %56, %59 : vector<8x8xf32>
    %61 = math.exp %60 : vector<8x8xf32>
    %cst_22 = arith.constant dense<0.000000e+00> : vector<8xf32>
    %62 = vector.multi_reduction <add>, %61, %cst_22 [1] : vector<8x8xf32> to vector<8xf32>
    %63 = vector.shape_cast %62 : vector<8xf32> to vector<8x1xf32>
    %64 = tpu.reciprocal %63 {approx = true} : vector<8x1xf32> -> vector<8x1xf32>
    %65 = vector.broadcast %64 : vector<8x1xf32> to vector<8x8xf32>
    %66 = arith.mulf %61, %65 : vector<8x8xf32>
    %67 = arith.truncf %66 : vector<8x8xf32> to vector<8x8xbf16>
    %cst_23 = arith.constant dense<0.000000e+00> : vector<8x8xf32>
    %68 = tpu.matmul %67, %53, %cst_23 {dimension_numbers = #tpu.dot_dimension_numbers<[1], [0], [0], [1], [0, 0, 1, 1], [], []>} : vector<8x8xbf16>, vector<8x8xbf16>, vector<8x8xf32> -> vector<8x8xf32>
    %c0_24 = arith.constant 0 : index
    %c0_25 = arith.constant 0 : index
    %69 = vector.load %arg9[%c0_24, %c0_25] : memref<8x32xf32, #tpu.memory_space<vmem>>, vector<8x8xf32>
    tpu.vector_store %arg9[%c0_24, %c0_25], %68 {strides = array<i32>} : memref<8x32xf32, #tpu.memory_space<vmem>>, vector<8x8xf32>,
    %70 = vector.extract_strided_slice %38 {offsets = [0, 8], sizes = [8, 8], strides = [1, 1]} : vector<8x32xf32> to vector<8x8xf32>
    %71 = arith.truncf %70 : vector<8x8xf32> to vector<8x8xbf16>
    %72 = vector.extract_strided_slice %41 {offsets = [0, 8], sizes = [8, 8], strides = [1, 1]} : vector<8x32xf32> to vector<8x8xf32>
    %73 = arith.truncf %72 : vector<8x8xf32> to vector<8x8xbf16>
    %74 = vector.extract_strided_slice %44 {offsets = [0, 8], sizes = [8, 8], strides = [1, 1]} : vector<8x32xf32> to vector<8x8xf32>
    %75 = arith.truncf %74 : vector<8x8xf32> to vector<8x8xbf16>
    %cst_26 = arith.constant dense<0.000000e+00> : vector<8x8xf32>
    %76 = tpu.matmul %71, %73, %cst_26 {dimension_numbers = #tpu.dot_dimension_numbers<[1], [1], [0], [0], [0, 0, 1, 0], [], []>} : vector<8x8xbf16>, vector<8x8xbf16>, vector<8x8xf32> -> vector<8x8xf32>
    %cst_27 = arith.constant -1.000000e+30 : f32
    %77 = vector.broadcast %cst_27 : f32 to vector<8x8xf32>
    %78 = arith.select %47, %76, %77 : vector<8x8xi1>, vector<8x8xf32>
    %cst_28 = arith.constant dense<0xFF800000> : vector<8xf32>
    %79 = vector.multi_reduction <maximumf>, %78, %cst_28 [1] : vector<8x8xf32> to vector<8xf32>
    %80 = vector.shape_cast %79 : vector<8xf32> to vector<8x1xf32>
    %81 = vector.broadcast %80 : vector<8x1xf32> to vector<8x8xf32>
    %82 = arith.subf %78, %81 : vector<8x8xf32>
    %83 = math.exp %82 : vector<8x8xf32>
    %cst_29 = arith.constant dense<0.000000e+00> : vector<8xf32>
    %84 = vector.multi_reduction <add>, %83, %cst_29 [1] : vector<8x8xf32> to vector<8xf32>
    %85 = vector.shape_cast %84 : vector<8xf32> to vector<8x1xf32>
    %86 = tpu.reciprocal %85 {approx = true} : vector<8x1xf32> -> vector<8x1xf32>
    %87 = vector.broadcast %86 : vector<8x1xf32> to vector<8x8xf32>
    %88 = arith.mulf %83, %87 : vector<8x8xf32>
    %89 = arith.truncf %88 : vector<8x8xf32> to vector<8x8xbf16>
    %cst_30 = arith.constant dense<0.000000e+00> : vector<8x8xf32>
    %90 = tpu.matmul %89, %75, %cst_30 {dimension_numbers = #tpu.dot_dimension_numbers<[1], [0], [0], [1], [0, 0, 1, 1], [], []>} : vector<8x8xbf16>, vector<8x8xbf16>, vector<8x8xf32> -> vector<8x8xf32>
    %c0_31 = arith.constant 0 : index
    %c8_32 = arith.constant 8 : index
    %91 = vector.load %arg9[%c0_31, %c8_32] : memref<8x32xf32, #tpu.memory_space<vmem>>, vector<8x8xf32>
    tpu.vector_store %arg9[%c0_31, %c8_32], %90 {strides = array<i32>} : memref<8x32xf32, #tpu.memory_space<vmem>>, vector<8x8xf32>,
    %92 = vector.extract_strided_slice %38 {offsets = [0, 16], sizes = [8, 8], strides = [1, 1]} : vector<8x32xf32> to vector<8x8xf32>
    %93 = arith.truncf %92 : vector<8x8xf32> to vector<8x8xbf16>
    %94 = vector.extract_strided_slice %41 {offsets = [0, 16], sizes = [8, 8], strides = [1, 1]} : vector<8x32xf32> to vector<8x8xf32>
    %95 = arith.truncf %94 : vector<8x8xf32> to vector<8x8xbf16>
    %96 = vector.extract_strided_slice %44 {offsets = [0, 16], sizes = [8, 8], strides = [1, 1]} : vector<8x32xf32> to vector<8x8xf32>
    %97 = arith.truncf %96 : vector<8x8xf32> to vector<8x8xbf16>
    %cst_33 = arith.constant dense<0.000000e+00> : vector<8x8xf32>
    %98 = tpu.matmul %93, %95, %cst_33 {dimension_numbers = #tpu.dot_dimension_numbers<[1], [1], [0], [0], [0, 0, 1, 0], [], []>} : vector<8x8xbf16>, vector<8x8xbf16>, vector<8x8xf32> -> vector<8x8xf32>
    %cst_34 = arith.constant -1.000000e+30 : f32
    %99 = vector.broadcast %cst_34 : f32 to vector<8x8xf32>
    %100 = arith.select %47, %98, %99 : vector<8x8xi1>, vector<8x8xf32>
    %cst_35 = arith.constant dense<0xFF800000> : vector<8xf32>
    %101 = vector.multi_reduction <maximumf>, %100, %cst_35 [1] : vector<8x8xf32> to vector<8xf32>
    %102 = vector.shape_cast %101 : vector<8xf32> to vector<8x1xf32>
    %103 = vector.broadcast %102 : vector<8x1xf32> to vector<8x8xf32>
    %104 = arith.subf %100, %103 : vector<8x8xf32>
    %105 = math.exp %104 : vector<8x8xf32>
    %cst_36 = arith.constant dense<0.000000e+00> : vector<8xf32>
    %106 = vector.multi_reduction <add>, %105, %cst_36 [1] : vector<8x8xf32> to vector<8xf32>
    %107 = vector.shape_cast %106 : vector<8xf32> to vector<8x1xf32>
    %108 = tpu.reciprocal %107 {approx = true} : vector<8x1xf32> -> vector<8x1xf32>
    %109 = vector.broadcast %108 : vector<8x1xf32> to vector<8x8xf32>
    %110 = arith.mulf %105, %109 : vector<8x8xf32>
    %111 = arith.truncf %110 : vector<8x8xf32> to vector<8x8xbf16>
    %cst_37 = arith.constant dense<0.000000e+00> : vector<8x8xf32>
    %112 = tpu.matmul %111, %97, %cst_37 {dimension_numbers = #tpu.dot_dimension_numbers<[1], [0], [0], [1], [0, 0, 1, 1], [], []>} : vector<8x8xbf16>, vector<8x8xbf16>, vector<8x8xf32> -> vector<8x8xf32>
    %c0_38 = arith.constant 0 : index
    %c16 = arith.constant 16 : index
    %113 = vector.load %arg9[%c0_38, %c16] : memref<8x32xf32, #tpu.memory_space<vmem>>, vector<8x8xf32>
    tpu.vector_store %arg9[%c0_38, %c16], %112 {strides = array<i32>} : memref<8x32xf32, #tpu.memory_space<vmem>>, vector<8x8xf32>,
    %114 = vector.extract_strided_slice %38 {offsets = [0, 24], sizes = [8, 8], strides = [1, 1]} : vector<8x32xf32> to vector<8x8xf32>
    %115 = arith.truncf %114 : vector<8x8xf32> to vector<8x8xbf16>
    %116 = vector.extract_strided_slice %41 {offsets = [0, 24], sizes = [8, 8], strides = [1, 1]} : vector<8x32xf32> to vector<8x8xf32>
    %117 = arith.truncf %116 : vector<8x8xf32> to vector<8x8xbf16>
    %118 = vector.extract_strided_slice %44 {offsets = [0, 24], sizes = [8, 8], strides = [1, 1]} : vector<8x32xf32> to vector<8x8xf32>
    %119 = arith.truncf %118 : vector<8x8xf32> to vector<8x8xbf16>
    %cst_39 = arith.constant dense<0.000000e+00> : vector<8x8xf32>
    %120 = tpu.matmul %115, %117, %cst_39 {dimension_numbers = #tpu.dot_dimension_numbers<[1], [1], [0], [0], [0, 0, 1, 0], [], []>} : vector<8x8xbf16>, vector<8x8xbf16>, vector<8x8xf32> -> vector<8x8xf32>
    %cst_40 = arith.constant -1.000000e+30 : f32
    %121 = vector.broadcast %cst_40 : f32 to vector<8x8xf32>
    %122 = arith.select %47, %120, %121 : vector<8x8xi1>, vector<8x8xf32>
    %cst_41 = arith.constant dense<0xFF800000> : vector<8xf32>
    %123 = vector.multi_reduction <maximumf>, %122, %cst_41 [1] : vector<8x8xf32> to vector<8xf32>
    %124 = vector.shape_cast %123 : vector<8xf32> to vector<8x1xf32>
    %125 = vector.broadcast %124 : vector<8x1xf32> to vector<8x8xf32>
    %126 = arith.subf %122, %125 : vector<8x8xf32>
    %127 = math.exp %126 : vector<8x8xf32>
    %cst_42 = arith.constant dense<0.000000e+00> : vector<8xf32>
    %128 = vector.multi_reduction <add>, %127, %cst_42 [1] : vector<8x8xf32> to vector<8xf32>
    %129 = vector.shape_cast %128 : vector<8xf32> to vector<8x1xf32>
    %130 = tpu.reciprocal %129 {approx = true} : vector<8x1xf32> -> vector<8x1xf32>
    %131 = vector.broadcast %130 : vector<8x1xf32> to vector<8x8xf32>
    %132 = arith.mulf %127, %131 : vector<8x8xf32>
    %133 = arith.truncf %132 : vector<8x8xf32> to vector<8x8xbf16>
    %cst_43 = arith.constant dense<0.000000e+00> : vector<8x8xf32>
    %134 = tpu.matmul %133, %119, %cst_43 {dimension_numbers = #tpu.dot_dimension_numbers<[1], [0], [0], [1], [0, 0, 1, 1], [], []>} : vector<8x8xbf16>, vector<8x8xbf16>, vector<8x8xf32> -> vector<8x8xf32>
    %c0_44 = arith.constant 0 : index
    %c24 = arith.constant 24 : index
    %135 = vector.load %arg9[%c0_44, %c24] : memref<8x32xf32, #tpu.memory_space<vmem>>, vector<8x8xf32>
    tpu.vector_store %arg9[%c0_44, %c24], %134 {strides = array<i32>} : memref<8x32xf32, #tpu.memory_space<vmem>>, vector<8x8xf32>,
    %c0_45 = arith.constant 0 : index
    %c0_46 = arith.constant 0 : index
    %136 = vector.load %arg9[%c0_45, %c0_46] : memref<8x32xf32, #tpu.memory_space<vmem>>, vector<8x32xf32>
    %137 = arith.truncf %136 : vector<8x32xf32> to vector<8x32xbf16>
    %c0_47 = arith.constant 0 : index
    %c0_48 = arith.constant 0 : index
    %138 = vector.load %arg4[%c0_47, %c0_48] : memref<32x32xbf16, #tpu.memory_space<vmem>>, vector<32x32xbf16>
    %cst_49 = arith.constant dense<0.000000e+00> : vector<8x32xf32>
    %139 = tpu.matmul %137, %138, %cst_49 {dimension_numbers = #tpu.dot_dimension_numbers<[1], [0], [0], [1], [0, 0, 1, 1], [], []>} : vector<8x32xbf16>, vector<32x32xbf16>, vector<8x32xf32> -> vector<8x32xf32>
    %140 = vector.broadcast %6 : vector<1x32xf32> to vector<8x32xf32>
    %141 = arith.addf %139, %140 : vector<8x32xf32>
    %142 = arith.addf %1, %141 : vector<8x32xf32>
    %cst_50 = arith.constant dense<0.000000e+00> : vector<8xf32>
    %143 = vector.multi_reduction <add>, %142, %cst_50 [1] : vector<8x32xf32> to vector<8xf32>
    %144 = vector.shape_cast %143 : vector<8xf32> to vector<8x1xf32>
    %cst_51 = arith.constant 3.200000e+01 : f32
    %145 = vector.broadcast %cst_51 : f32 to vector<8x1xf32>
    %146 = arith.divf %144, %145 : vector<8x1xf32>
    %147 = vector.broadcast %146 : vector<8x1xf32> to vector<8x32xf32>
    %148 = arith.subf %142, %147 : vector<8x32xf32>
    %149 = arith.mulf %148, %148 : vector<8x32xf32>
    %cst_52 = arith.constant dense<0.000000e+00> : vector<8xf32>
    %150 = vector.multi_reduction <add>, %149, %cst_52 [1] : vector<8x32xf32> to vector<8xf32>
    %151 = vector.shape_cast %150 : vector<8xf32> to vector<8x1xf32>
    %cst_53 = arith.constant 3.200000e+01 : f32
    %152 = vector.broadcast %cst_53 : f32 to vector<8x1xf32>
    %153 = arith.divf %151, %152 : vector<8x1xf32>
    %154 = vector.broadcast %146 : vector<8x1xf32> to vector<8x32xf32>
    %155 = arith.subf %142, %154 : vector<8x32xf32>
    %cst_54 = arith.constant 9.99999974E-6 : f32
    %156 = vector.broadcast %cst_54 : f32 to vector<8x1xf32>
    %157 = arith.addf %153, %156 : vector<8x1xf32>
    %158 = math.rsqrt %157 : vector<8x1xf32>
    %159 = vector.broadcast %158 : vector<8x1xf32> to vector<8x32xf32>
    %160 = arith.mulf %155, %159 : vector<8x32xf32>
    %161 = vector.broadcast %4 : vector<1x32xf32> to vector<8x32xf32>
    %162 = arith.mulf %160, %161 : vector<8x32xf32>
    %163 = vector.broadcast %5 : vector<1x32xf32> to vector<8x32xf32>
    %164 = arith.addf %162, %163 : vector<8x32xf32>
    %165 = arith.truncf %164 : vector<8x32xf32> to vector<8x32xbf16>
    %c0_55 = arith.constant 0 : index
    %c0_56 = arith.constant 0 : index
    %166 = vector.load %arg5[%c0_55, %c0_56] : memref<32x128xbf16, #tpu.memory_space<vmem>>, vector<32x128xbf16>
    %cst_57 = arith.constant dense<0.000000e+00> : vector<8x128xf32>
    %167 = tpu.matmul %165, %166, %cst_57 {dimension_numbers = #tpu.dot_dimension_numbers<[1], [0], [0], [1], [0, 0, 1, 1], [], []>} : vector<8x32xbf16>, vector<32x128xbf16>, vector<8x128xf32> -> vector<8x128xf32>
    %c0_58 = arith.constant 0 : index
    %c0_59 = arith.constant 0 : index
    %168 = vector.load %arg6[%c0_58, %c0_59] : memref<1x128xf32, #tpu.memory_space<vmem>>, vector<1x128xf32>
    %169 = vector.broadcast %168 : vector<1x128xf32> to vector<8x128xf32>
    %170 = arith.addf %167, %169 : vector<8x128xf32>
    %cst_60 = arith.constant 5.000000e-01 : f32
    %171 = vector.broadcast %cst_60 : f32 to vector<8x128xf32>
    %172 = arith.mulf %171, %170 : vector<8x128xf32>
    %cst_61 = arith.constant 4.471500e-02 : f32
    %173 = vector.broadcast %cst_61 : f32 to vector<8x128xf32>
    %174 = arith.mulf %173, %170 : vector<8x128xf32>
    %175 = arith.mulf %174, %170 : vector<8x128xf32>
    %176 = arith.mulf %175, %170 : vector<8x128xf32>
    %177 = arith.addf %170, %176 : vector<8x128xf32>
    %cst_62 = arith.constant 0.797884583 : f32
    %178 = vector.broadcast %cst_62 : f32 to vector<8x128xf32>
    %179 = arith.mulf %178, %177 : vector<8x128xf32>
    %180 = math.tanh %179 : vector<8x128xf32>
    %cst_63 = arith.constant 1.000000e+00 : f32
    %181 = vector.broadcast %cst_63 : f32 to vector<8x128xf32>
    %182 = arith.addf %181, %180 : vector<8x128xf32>
    %183 = arith.mulf %172, %182 : vector<8x128xf32>
    %184 = arith.truncf %183 : vector<8x128xf32> to vector<8x128xbf16>
    %c0_64 = arith.constant 0 : index
    %c0_65 = arith.constant 0 : index
    %185 = vector.load %arg7[%c0_64, %c0_65] : memref<128x32xbf16, #tpu.memory_space<vmem>>, vector<128x32xbf16>
    %cst_66 = arith.constant dense<0.000000e+00> : vector<8x32xf32>
    %186 = tpu.matmul %184, %185, %cst_66 {dimension_numbers = #tpu.dot_dimension_numbers<[1], [0], [0], [1], [0, 0, 1, 1], [], []>} : vector<8x128xbf16>, vector<128x32xbf16>, vector<8x32xf32> -> vector<8x32xf32>
    %187 = vector.broadcast %7 : vector<1x32xf32> to vector<8x32xf32>
    %188 = arith.addf %186, %187 : vector<8x32xf32>
    %189 = arith.addf %142, %188 : vector<8x32xf32>
    %c0_67 = arith.constant 0 : index
    %c0_68 = arith.constant 0 : index
    %c0_69 = arith.constant 0 : index
    %190 = vector.load %arg8[%c0_67, %c0_68, %c0_69] : memref<1x8x32xf32, #tpu.memory_space<vmem>>, vector<1x8x32xf32>
    %191 = vector.shape_cast %190 : vector<1x8x32xf32> to vector<8x32xf32>
    %192 = vector.shape_cast %189 : vector<8x32xf32> to vector<1x8x32xf32>
    tpu.vector_store %arg8[%c0_67, %c0_68, %c0_69], %192 {strides = array<i32>} : memref<1x8x32xf32, #tpu.memory_space<vmem>>, vector<1x8x32xf32>,
    return
  }
  func.func @transform_0(%arg0: i32) -> (i32, i32, i32) {
    %c0_i32 = arith.constant 0 : i32
    %c0_i32_0 = arith.constant 0 : i32
    %c0_i32_1 = arith.constant 0 : i32
    return %arg0, %c0_i32, %c0_i32_0 : i32, i32, i32
  }
  func.func @transform_1(%arg0: i32) -> (i32, i32) {
    %c0_i32 = arith.constant 0 : i32
    %c0_i32_0 = arith.constant 0 : i32
    %c0_i32_1 = arith.constant 0 : i32
    return %c0_i32, %c0_i32_0 : i32, i32
  }
  func.func @transform_2(%arg0: i32) -> (i32, i32) {
    %c0_i32 = arith.constant 0 : i32
    %c0_i32_0 = arith.constant 0 : i32
    %c0_i32_1 = arith.constant 0 : i32
    return %c0_i32, %c0_i32_0 : i32, i32
  }
  func.func @transform_3(%arg0: i32) -> (i32, i32) {
    %c0_i32 = arith.constant 0 : i32
    %c0_i32_0 = arith.constant 0 : i32
    %c0_i32_1 = arith.constant 0 : i32
    return %c0_i32, %c0_i32_0 : i32, i32
  }
  func.func @transform_4(%arg0: i32) -> (i32, i32) {
    %c0_i32 = arith.constant 0 : i32
    %c0_i32_0 = arith.constant 0 : i32
    %c0_i32_1 = arith.constant 0 : i32
    return %c0_i32, %c0_i32_0 : i32, i32
  }
  func.func @transform_5(%arg0: i32) -> (i32, i32) {
    %c0_i32 = arith.constant 0 : i32
    %c0_i32_0 = arith.constant 0 : i32
    %c0_i32_1 = arith.constant 0 : i32
    return %c0_i32, %c0_i32_0 : i32, i32
  }
  func.func @transform_6(%arg0: i32) -> (i32, i32) {
    %c0_i32 = arith.constant 0 : i32
    %c0_i32_0 = arith.constant 0 : i32
    %c0_i32_1 = arith.constant 0 : i32
    return %c0_i32, %c0_i32_0 : i32, i32
  }
  func.func @transform_7(%arg0: i32) -> (i32, i32, i32) {
    %c0_i32 = arith.constant 0 : i32
    %c0_i32_0 = arith.constant 0 : i32
    %c0_i32_1 = arith.constant 0 : i32
    return %arg0, %c0_i32, %c0_i32_0 : i32, i32, i32
  }
}

</mosaic_0001>

<llo_original>
// kernel: gpt_block_forward.1
$region0: #{gpt_block_forward.1}
  #allocation0 [shape = 'u32[]', space=smem, size = 0x4, offset = 0x4, fixed_abs, tag = 'smem constant byte address 0x4 - core index']
  #allocation1 [shape = 'u32[144,128]{1,0:T(1,128)}', space=vmem, size = 0x12000, scoped, tag = 'internal scratch']
  #allocation2 [shape = 'f32[8,32]{1,0:T(8,128)}', space=vmem, size = 0x1000, scoped, tag = 'scratch operand']
  %s0 = inlined_call_operand.vmem [shape: f32[2,8,32], index: 0, kind: input, shape index: {}]
  %s1 = inlined_call_operand.vmem [shape: f32[9,32], index: 1, kind: input, shape index: {}]
  %s2 = inlined_call_operand.vmem [shape: bf16[32,96], index: 2, kind: input, shape index: {}]
  %s3 = inlined_call_operand.vmem [shape: bf16[32,32], index: 3, kind: input, shape index: {}]
  %s4 = inlined_call_operand.vmem [shape: bf16[32,128], index: 4, kind: input, shape index: {}]
  %s5 = inlined_call_operand.vmem [shape: f32[1,128], index: 5, kind: input, shape index: {}]
  %s6 = inlined_call_operand.vmem [shape: bf16[128,32], index: 6, kind: input, shape index: {}]
  %s7 = inlined_call_operand.hbm [shape: f32[2,8,32], index: 7, kind: output, shape index: {}]
  %s8 = sld [smem:[#allocation0]]
  $region61: #{gpt_block_forward.1} parent=0
    _
  %s10 = ssub.s32 1, %s8
  %s11 = scalar_select 0, %s10, %s8
  $region1: #{gpt_block_forward.1} parent=0
    #allocation3 [shape = 'u8[8192]{0}', space=vmem, size = 0x2000, scoped, tag = 'output window, operand 0']
    #allocation4 [shape = 's32[2]{0}', space=sflag, size = 0x8, scoped, tag = 'scoped memory for gpt_block_forward.1']
    %12 = vsyncpa [#allocation4], 0
    %s13 = scalar_lea.sflag [#allocation4], 1
    %14 = vsyncpa %s13, 0
    loop: start=0, step=1, limit=4
    $region2: #{gpt_block_forward.1} parent=1 // loop_pre_header
      _
    $region3: #{gpt_block_forward.1} parent=1 // loop_header
      %s16 = sphi 0, %s20
      %p17 = scmp.ge.s32.totalorder %s16, 4
      %s26 = sphi 0, %s28
      %s29 = sphi 0, %s26
      %s30 = sphi 0, %s29
      %s46 = sphi 0, %s30
      %s50 = sphi 0, %s50
      %s52 = sphi 0, %s50
      %s53 = sphi 0, %s52
      %s67 = sphi 0, %s53
      %s71 = sphi 0, %s71
      %s73 = sphi 0, %s71
      %s74 = sphi 0, %s73
      %s88 = sphi 0, %s74
      %s92 = sphi 0, %s92
      %s94 = sphi 0, %s92
      %s95 = sphi 0, %s94
      %s109 = sphi 0, %s95
      %s113 = sphi 0, %s113
      %s115 = sphi 0, %s113
      %s116 = sphi 0, %s115
      %s130 = sphi 0, %s116
      %s134 = sphi 0, %s134
      %s136 = sphi 0, %s134
      %s137 = sphi 0, %s136
      %s151 = sphi 0, %s137
      %s155 = sphi 0, %s155
      %s157 = sphi 0, %s155
      %s158 = sphi 0, %s157
      %s172 = sphi 0, %s158
      %s178 = sphi 0, %s180
      %s181 = sphi 0, %s178
      %s182 = sphi 0, %s181
      %s198 = sphi 0, %s182
    $region4: #{gpt_block_forward.1} parent=1 // loop_header_branch
      %19 = sbr.rel (%p17) target = $region8
    $region5: #{gpt_block_forward.1} parent=1 // loop_body
      %s21 = ssub.s32 %s16, 1
      %s22 = ssub.s32 %s16, 2
      %s23 = sadd.s32 %s16, 1
      %s24 = ssub.s32 %s16, %s23
      %p25 = scmp.eq.s32.totalorder %s24, 0
      %s27 = sadd.s32 %s26, 1
      %s28 = scalar_select %p25, %s26, %s27
      %p31 = pneg %p25
      %p32 = scmp.eq.s32.totalorder %s16, 1
      %p33 = por %p31, %p32
      %p34 = scmp.ne.s32.totalorder %s26, %s29
      %p35 = scmp.eq.s32.totalorder %s16, 0
      %p36 = por %p34, %p35
      %p37 = scmp.ne.s32.totalorder %s26, %s29
      %p38 = scmp.eq.s32.totalorder %s21, 1
      %p39 = por %p37, %p38
      %p40 = scmp.ne.s32.totalorder %s29, %s30
      %p41 = scmp.eq.s32.totalorder %s21, 0
      %p42 = por %p40, %p41
      %p43 = scmp.ne.s32.totalorder %s29, %s30
      %p44 = scmp.eq.s32.totalorder %s22, 1
      %p45 = por %p43, %p44
      %p47 = scmp.ne.s32.totalorder %s30, %s46
      %p48 = scmp.eq.s32.totalorder %s22, 0
      %p49 = por %p47, %p48
      %s51 = sadd.s32 %s50, 1
      %p54 = scmp.eq.s32.totalorder %s16, 1
      %p55 = scmp.ne.s32.totalorder %s50, %s52
      %p56 = scmp.eq.s32.totalorder %s16, 0
      %p57 = por %p55, %p56
      %p58 = scmp.ne.s32.totalorder %s50, %s52
      %p59 = scmp.eq.s32.totalorder %s21, 1
      %p60 = por %p58, %p59
      %p61 = scmp.ne.s32.totalorder %s52, %s53
      %p62 = scmp.eq.s32.totalorder %s21, 0
      %p63 = por %p61, %p62
      %p64 = scmp.ne.s32.totalorder %s52, %s53
      %p65 = scmp.eq.s32.totalorder %s22, 1
      %p66 = por %p64, %p65
      %p68 = scmp.ne.s32.totalorder %s53, %s67
      %p69 = scmp.eq.s32.totalorder %s22, 0
      %p70 = por %p68, %p69
      %s72 = sadd.s32 %s71, 1
      %p75 = scmp.eq.s32.totalorder %s16, 1
      %p76 = scmp.ne.s32.totalorder %s71, %s73
      %p77 = scmp.eq.s32.totalorder %s16, 0
      %p78 = por %p76, %p77
      %p79 = scmp.ne.s32.totalorder %s71, %s73
      %p80 = scmp.eq.s32.totalorder %s21, 1
      %p81 = por %p79, %p80
      %p82 = scmp.ne.s32.totalorder %s73, %s74
      %p83 = scmp.eq.s32.totalorder %s21, 0
      %p84 = por %p82, %p83
      %p85 = scmp.ne.s32.totalorder %s73, %s74
      %p86 = scmp.eq.s32.totalorder %s22, 1
      %p87 = por %p85, %p86
      %p89 = scmp.ne.s32.totalorder %s74, %s88
      %p90 = scmp.eq.s32.totalorder %s22, 0
      %p91 = por %p89, %p90
      %s93 = sadd.s32 %s92, 1
      %p96 = scmp.eq.s32.totalorder %s16, 1
      %p97 = scmp.ne.s32.totalorder %s92, %s94
      %p98 = scmp.eq.s32.totalorder %s16, 0
      %p99 = por %p97, %p98
      %p100 = scmp.ne.s32.totalorder %s92, %s94
      %p101 = scmp.eq.s32.totalorder %s21, 1
      %p102 = por %p100, %p101
      %p103 = scmp.ne.s32.totalorder %s94, %s95
      %p104 = scmp.eq.s32.totalorder %s21, 0
      %p105 = por %p103, %p104
      %p106 = scmp.ne.s32.totalorder %s94, %s95
      %p107 = scmp.eq.s32.totalorder %s22, 1
      %p108 = por %p106, %p107
      %p110 = scmp.ne.s32.totalorder %s95, %s109
      %p111 = scmp.eq.s32.totalorder %s22, 0
      %p112 = por %p110, %p111
      %s114 = sadd.s32 %s113, 1
      %p117 = scmp.eq.s32.totalorder %s16, 1
      %p118 = scmp.ne.s32.totalorder %s113, %s115
      %p119 = scmp.eq.s32.totalorder %s16, 0
      %p120 = por %p118, %p119
      %p121 = scmp.ne.s32.totalorder %s113, %s115
      %p122 = scmp.eq.s32.totalorder %s21, 1
      %p123 = por %p121, %p122
      %p124 = scmp.ne.s32.totalorder %s115, %s116
      %p125 = scmp.eq.s32.totalorder %s21, 0
      %p126 = por %p124, %p125
      %p127 = scmp.ne.s32.totalorder %s115, %s116
      %p128 = scmp.eq.s32.totalorder %s22, 1
      %p129 = por %p127, %p128
      %p131 = scmp.ne.s32.totalorder %s116, %s130
      %p132 = scmp.eq.s32.totalorder %s22, 0
      %p133 = por %p131, %p132
      %s135 = sadd.s32 %s134, 1
      %p138 = scmp.eq.s32.totalorder %s16, 1
      %p139 = scmp.ne.s32.totalorder %s134, %s136
      %p140 = scmp.eq.s32.totalorder %s16, 0
      %p141 = por %p139, %p140
      %p142 = scmp.ne.s32.totalorder %s134, %s136
      %p143 = scmp.eq.s32.totalorder %s21, 1
      %p144 = por %p142, %p143
      %p145 = scmp.ne.s32.totalorder %s136, %s137
      %p146 = scmp.eq.s32.totalorder %s21, 0
      %p147 = por %p145, %p146
      %p148 = scmp.ne.s32.totalorder %s136, %s137
      %p149 = scmp.eq.s32.totalorder %s22, 1
      %p150 = por %p148, %p149
      %p152 = scmp.ne.s32.totalorder %s137, %s151
      %p153 = scmp.eq.s32.totalorder %s22, 0
      %p154 = por %p152, %p153
      %s156 = sadd.s32 %s155, 1
      %p159 = scmp.eq.s32.totalorder %s16, 1
      %p160 = scmp.ne.s32.totalorder %s155, %s157
      %p161 = scmp.eq.s32.totalorder %s16, 0
      %p162 = por %p160, %p161
      %p163 = scmp.ne.s32.totalorder %s155, %s157
      %p164 = scmp.eq.s32.totalorder %s21, 1
      %p165 = por %p163, %p164
      %p166 = scmp.ne.s32.totalorder %s157, %s158
      %p167 = scmp.eq.s32.totalorder %s21, 0
      %p168 = por %p166, %p167
      %p169 = scmp.ne.s32.totalorder %s157, %s158
      %p170 = scmp.eq.s32.totalorder %s22, 1
      %p171 = por %p169, %p170
      %p173 = scmp.ne.s32.totalorder %s158, %s172
      %p174 = scmp.eq.s32.totalorder %s22, 0
      %p175 = por %p173, %p174
      %s176 = ssub.s32 %s16, %s23
      %p177 = scmp.eq.s32.totalorder %s176, 0
      %s179 = sadd.s32 %s178, 1
      %s180 = scalar_select %p177, %s178, %s179
      %p183 = pneg %p177
      %p184 = scmp.eq.s32.totalorder %s16, 1
      %p185 = por %p183, %p184
      %p186 = scmp.ne.s32.totalorder %s178, %s181
      %p187 = scmp.eq.s32.totalorder %s16, 0
      %p188 = por %p186, %p187
      %p189 = scmp.ne.s32.totalorder %s178, %s181
      %p190 = scmp.eq.s32.totalorder %s21, 1
      %p191 = por %p189, %p190
      %p192 = scmp.ne.s32.totalorder %s181, %s182
      %p193 = scmp.eq.s32.totalorder %s21, 0
      %p194 = por %p192, %p193
      %p195 = scmp.ne.s32.totalorder %s181, %s182
      %p196 = scmp.eq.s32.totalorder %s22, 1
      %p197 = por %p195, %p196
      %p199 = scmp.ne.s32.totalorder %s182, %s198
      %p200 = scmp.eq.s32.totalorder %s22, 0
      %p201 = por %p199, %p200
      %p202 = scmp.le.s32.totalorder 1, %s16
      %p203 = scmp.lt.s32.totalorder %s16, 3
      %p204 = pnand %p202, %p203
      %p205 = pneg %p204
      // Predicated region
      $region9: #{gpt_block_forward.1} parent=5 // pred_check
        _
      $region10: #{gpt_block_forward.1} parent=5 // pred_check_branch
        %207 = sbr.rel (%p204) target = $region12
      $region11: #{gpt_block_forward.1} parent=5 // pred_region
        %s208 = ssub.s32 %s16, 1
        // Predicated region
        $region13: #{gpt_block_forward.1} parent=11 // pred_check
          %p209 = pneg %p63
        $region14: #{gpt_block_forward.1} parent=11 // pred_check_branch
          %211 = sbr.rel (%p209) target = $region16
        $region15: #{gpt_block_forward.1} parent=11 // pred_region
          _
        $region16: #{gpt_block_forward.1} parent=11 // pred_fallthru
          _
        // Predicated region
        $region17: #{gpt_block_forward.1} parent=11 // pred_check
          %p212 = pneg %p84
        $region18: #{gpt_block_forward.1} parent=11 // pred_check_branch
          %214 = sbr.rel (%p212) target = $region20
        $region19: #{gpt_block_forward.1} parent=11 // pred_region
          _
        $region20: #{gpt_block_forward.1} parent=11 // pred_fallthru
          _
        // Predicated region
        $region21: #{gpt_block_forward.1} parent=11 // pred_check
          %p215 = pneg %p105
        $region22: #{gpt_block_forward.1} parent=11 // pred_check_branch
          %217 = sbr.rel (%p215) target = $region24
        $region23: #{gpt_block_forward.1} parent=11 // pred_region
          _
        $region24: #{gpt_block_forward.1} parent=11 // pred_fallthru
          _
        // Predicated region
        $region25: #{gpt_block_forward.1} parent=11 // pred_check
          %p218 = pneg %p126
        $region26: #{gpt_block_forward.1} parent=11 // pred_check_branch
          %220 = sbr.rel (%p218) target = $region28
        $region27: #{gpt_block_forward.1} parent=11 // pred_region
          _
        $region28: #{gpt_block_forward.1} parent=11 // pred_fallthru
          _
        // Predicated region
        $region29: #{gpt_block_forward.1} parent=11 // pred_check
          %p221 = pneg %p147
        $region30: #{gpt_block_forward.1} parent=11 // pred_check_branch
          %223 = sbr.rel (%p221) target = $region32
        $region31: #{gpt_block_forward.1} parent=11 // pred_region
          _
        $region32: #{gpt_block_forward.1} parent=11 // pred_fallthru
          _
        // Predicated region
        $region33: #{gpt_block_forward.1} parent=11 // pred_check
          %p224 = pneg %p168
        $region34: #{gpt_block_forward.1} parent=11 // pred_check_branch
          %226 = sbr.rel (%p224) target = $region36
        $region35: #{gpt_block_forward.1} parent=11 // pred_region
          _
        $region36: #{gpt_block_forward.1} parent=11 // pred_fallthru
          _
      $region12: #{gpt_block_forward.1} parent=5 // pred_fallthru
        _
      %p227 = scmp.lt.s32.totalorder %s16, 2
      // Predicated region
      $region37: #{gpt_block_forward.1} parent=5 // pred_check
        %p228 = pneg %p227
      $region38: #{gpt_block_forward.1} parent=5 // pred_check_branch
        %230 = sbr.rel (%p228) target = $region40
      $region39: #{gpt_block_forward.1} parent=5 // pred_region
        // Predicated region
        $region41: #{gpt_block_forward.1} parent=39 // pred_check
          %p231 = pneg %p36
        $region42: #{gpt_block_forward.1} parent=39 // pred_check_branch
          %233 = sbr.rel (%p231) target = $region44
        $region43: #{gpt_block_forward.1} parent=39 // pred_region
          %p234 = scmp.lt.s32.totalorder %s16, 1
          %s235 = scalar_select %p234, %s16, 1
          %s236 = smul.addr %s235, 8
          %s237 = scalar_lea.vmem %s0, %s236
        $region44: #{gpt_block_forward.1} parent=39 // pred_fallthru
          _
      $region40: #{gpt_block_forward.1} parent=5 // pred_fallthru
        _
      %p238 = scmp.le.s32.totalorder 1, %s16
      %p239 = scmp.lt.s32.totalorder %s16, 3
      %p240 = pnand %p238, %p239
      %p241 = pneg %p240
      // Predicated region
      $region45: #{gpt_block_forward.1} parent=5 // pred_check
        _
      $region46: #{gpt_block_forward.1} parent=5 // pred_check_branch
        %243 = sbr.rel (%p240) target = $region48
      $region47: #{gpt_block_forward.1} parent=5 // pred_region
        %s244 = ssub.s32 %s16, 1
        %p245 = scmp.lt.s32.totalorder %s21, 1
        %s246 = scalar_select %p245, %s21, 1
        %s247 = smul.addr %s246, 8
        %s248 = scalar_lea.vmem %s0, %s247
        %p249 = pneg %p42
        %p250 = pneg %p39
        %p251 = pneg %p63
        %p252 = pneg %p60
        %p253 = pneg %p84
        %p254 = pneg %p81
        %p255 = pneg %p105
        %p256 = pneg %p102
        %p257 = pneg %p126
        %p258 = pneg %p123
        %p259 = pneg %p147
        %p260 = pneg %p144
        %p261 = pneg %p168
        %p262 = pneg %p165
        %p263 = pneg %p194
        %p264 = pneg %p191
        %s265 = sand.u32 %s181, 1
        %s266 = scalar_lea.sflag [#allocation4], %s265
        %s267 = sand.u32 %s181, 1
        %s268 = smul.addr %s267, 8
        %s269 = scalar_lea.vmem [#allocation3], %s268
        %p270 = scmp.lt.s32.totalorder %s21, 1
        %s271 = scalar_select %p270, %s21, 1
        %s272 = smul.addr %s271, 8
        %s273 = scalar_lea.vmem %s0, %s272
        %v275 = vld [vmem:[%s273] sm:$0xff]
        %v276 = vld [vmem:[%s1] sm:$0x1]
        %v277 = vld [vmem:[%s1 + $0x1] sm:$0x1]
        %v278 = vld [vmem:[%s1 + $0x2] sm:$0x1]
        %v279 = vld [vmem:[%s1 + $0x3] sm:$0x1]
        %v280 = vld [vmem:[%s1 + $0x4] sm:$0x1]
        %v281 = vld [vmem:[%s1 + $0x5] sm:$0x1]
        %v282 = vld [vmem:[%s1 + $0x6] sm:$0x1]
        %v283 = vld [vmem:[%s1 + $0x7] sm:$0x1]
        %v284 = vld [vmem:[%s1 + $0x8] sm:$0x1]
        %vm285 = vcmask 261120
        %v286 = vsel %vm285, %v275, 0.0
        %287 = vadd.xlane.f32.xlu0 %v286
        %v288 = vpop.xlane.xlu0 %287
        %v289 = vrcp.pop 32.0
        %v290 = vmul.f32 %v288, %v289
        %v291 = vsub.f32 %v275, %v290
        %v292 = vmul.f32 %v291, %v291
        %v293 = vsel %vm285, %v292, 0.0
        %294 = vadd.xlane.f32.xlu0 %v293
        %v295 = vpop.xlane.xlu0 %294
        %v296 = vmul.f32 %v295, %v289
        %v297 = vadd.f32 %v296, 1e-05
        %v298 = vrsqrt.pop %v297
        %v299 = vmul.f32 %v291, %v298
        %v300 = vlaneseq
        %v301 = vshrl.u32 %v300, 7
        %v302 = vsub.s32 0, %v301
        %v303 = vrot.slane %v276, %v302
        %v304 = vmul.f32 %v299, %v303
        %v305 = vlaneseq
        %v306 = vshrl.u32 %v305, 7
        %v307 = vsub.s32 0, %v306
        %v308 = vrot.slane %v277, %v307
        %v309 = vadd.f32 %v304, %v308
        %v310 = vpack.c.bf16 %v309, %v309
        %v311 = vld [vmem:[%s2] sm:$0xf]
        %v312 = vld [vmem:[%s2 + $0x4] sm:$0xf]
        %v313 = vld [vmem:[%s2 + $0x8] sm:$0xf]
        %v314 = vld [vmem:[%s2 + $0xc] sm:$0xf]
        %v319 = vunpack.c.l.b16 %v311
        %v320 = vunpack.c.l.b16 %v312
        %v321 = vunpack.c.l.b16 %v313
        %v322 = vunpack.c.l.b16 %v314
        %v323 = vpack.c.b16 %v320, %v319
        %v324 = vpack.c.b16 %v322, %v321
        %v328 = vsel %vm285, %v310, 0
        %330 = vmatprep.subr.bf16.mxu0 0
        %331 = vmatpush1.bf16.msra.mxu0 %v323
        %332 = vmatprep.subr.bf16.mxu0 0
        %333 = vmatpush1.bf16.msra.mxu0 %v324
        %334 = vmatprep.subr.bf16.mxu0 0
        %335 = vmatpush1.bf16.msra.mxu0 0
        %336 = vmatprep.subr.bf16.mxu0 0
        %337 = vmatpush1.bf16.msra.mxu0 0
        %338 = vmatprep.subr.bf16.mxu0 0
        %339 = vmatpush1.bf16.msra.mxu0 0
        %340 = vmatprep.subr.bf16.mxu0 0
        %341 = vmatpush1.bf16.msra.mxu0 0
        %342 = vmatprep.subr.bf16.mxu0 0
        %343 = vmatpush1.bf16.msra.mxu0 0
        %344 = vmatprep.subr.bf16.mxu0 0
        %345 = vmatpush1.bf16.msra.mxu0 0
        %346 = vmatprep.subr.bf16.mxu0 0
        %347 = vmatpush1.bf16.msra.mxu0 0
        %348 = vmatprep.subr.bf16.mxu0 0
        %349 = vmatpush1.bf16.msra.mxu0 0
        %350 = vmatprep.subr.bf16.mxu0 0
        %351 = vmatpush1.bf16.msra.mxu0 0
        %352 = vmatprep.subr.bf16.mxu0 0
        %353 = vmatpush1.bf16.msra.mxu0 0
        %354 = vmatprep.subr.bf16.mxu0 0
        %355 = vmatpush1.bf16.msra.mxu0 0
        %356 = vmatprep.subr.bf16.mxu0 0
        %357 = vmatpush1.bf16.msra.mxu0 0
        %358 = vmatprep.subr.bf16.mxu0 0
        %359 = vmatpush1.bf16.msra.mxu0 0
        %360 = vmatprep.subr.bf16.mxu0 0
        %361 = vmatpush1.bf16.msra.mxu0 0
        %362 = vmatprep.mubr.bf16.mxu0 0
        %363 = vmatmul.mubr.bf16.gmra.mrb[0].mxu0 %v328
        %v364 = vpop.f32.mrb[0].mxu0
        %v365 = vadd.f32 0.0, %v364
        %v366 = vpop.f32.mrb[0].mxu0
        %v367 = vpop.f32.mrb[0].mxu0
        %v368 = vpop.f32.mrb[0].mxu0
        %369 = vdwg.mxu0
        %v370 = vlaneseq
        %v371 = vshrl.u32 %v370, 7
        %v372 = vsub.s32 0, %v371
        %v373 = vrot.slane %v282, %v372
        %v374 = vadd.f32 %v365, %v373
        %v375 = vlaneseq
        %v376 = vshrl.u32 %v375, 7
        %v377 = vsub.s32 0, %v376
        %v378 = vrot.slane %v283, %v377
        %380 = vrot.lane.b32.xlu0 %v378, 32
        %v381 = vpop.permute.xlu0 %380
        %v383 = vadd.f32 %v365, %v381
        %v384 = vlaneseq
        %v385 = vshrl.u32 %v384, 7
        %v386 = vsub.s32 0, %v385
        %v387 = vrot.slane %v284, %v386
        %389 = vrot.lane.b32.xlu0 %v387, 64
        %v390 = vpop.permute.xlu0 %389
        %v392 = vadd.f32 %v365, %v390
        %v393 = vlaneseq
        %v394 = vshrl.u32 %v393, 7
        %v395 = vlaneseq
        %v396 = vand.u32 %v395, 127
        %vm397 = vcmp.ge.s32.totalorder %v394, %v396
        %v398 = vpack.c.bf16 %v374, %v374
        %v399 = vpack.c.bf16 %v383, %v383
        %v400 = vpack.c.bf16 %v392, %v392
        %402 = vrot.lane.b32.xlu0 %v399, 96
        %v403 = vpop.permute.xlu0 %402
        %vm404 = vcmask 64512
        %v406 = vsel %vm404, %v398, 0
        %v409 = vsel %vm404, %v403, 0
        %411 = vmatprep.subr.bf16.mxu0 0
        %412 = vmatpush1.bf16.xpose.msra.mxu0 %v409
        %413 = vmatprep.subr.bf16.mxu0 0
        %414 = vmatpush1.bf16.xpose.msra.mxu0 0
        %415 = vmatprep.subr.bf16.mxu0 0
        %416 = vmatpush1.bf16.xpose.msra.mxu0 0
        %417 = vmatprep.subr.bf16.mxu0 0
        %418 = vmatpush1.bf16.xpose.msra.mxu0 0
        %419 = vmatprep.subr.bf16.mxu0 0
        %420 = vmatpush1.bf16.xpose.msra.mxu0 0
        %421 = vmatprep.subr.bf16.mxu0 0
        %422 = vmatpush1.bf16.xpose.msra.mxu0 0
        %423 = vmatprep.subr.bf16.mxu0 0
        %424 = vmatpush1.bf16.xpose.msra.mxu0 0
        %425 = vmatprep.subr.bf16.mxu0 0
        %426 = vmatpush1.bf16.xpose.msra.mxu0 0
        %427 = vmatprep.subr.bf16.mxu0 0
        %428 = vmatpush1.bf16.xpose.msra.mxu0 0
        %429 = vmatprep.subr.bf16.mxu0 0
        %430 = vmatpush1.bf16.xpose.msra.mxu0 0
        %431 = vmatprep.subr.bf16.mxu0 0
        %432 = vmatpush1.bf16.xpose.msra.mxu0 0
        %433 = vmatprep.subr.bf16.mxu0 0
        %434 = vmatpush1.bf16.xpose.msra.mxu0 0
        %435 = vmatprep.subr.bf16.mxu0 0
        %436 = vmatpush1.bf16.xpose.msra.mxu0 0
        %437 = vmatprep.subr.bf16.mxu0 0
        %438 = vmatpush1.bf16.xpose.msra.mxu0 0
        %439 = vmatprep.subr.bf16.mxu0 0
        %440 = vmatpush1.bf16.xpose.msra.mxu0 0
        %441 = vmatprep.subr.bf16.mxu0 0
        %442 = vmatpush1.bf16.xpose.msra.mxu0 0
        %443 = vmatprep.mubr.bf16.mxu0 0
        %444 = vmatmul.mubr.bf16.gmra.mrb[0].mxu0 %v406
        %v445 = vpop.f32.mrb[0].mxu0
        %v446 = vadd.f32 0.0, %v445
        %v447 = vpop.f32.mrb[0].mxu0
        %v448 = vpop.f32.mrb[0].mxu0
        %v449 = vpop.f32.mrb[0].mxu0
        %450 = vdwg.mxu0
        %v451 = vsel %vm397, %v446, -1e+30
        %v452 = vsel %vm404, %v451, -inf
        %453 = vmax.xlane.f32.xlu0 %v452
        %v454 = vpop.xlane.xlu0 %453
        %v455 = vsub.f32 %v451, %v454
        %v456 = vmul.f32 %v455, 1.442695
        %v457 = vpow.pop %v456
        %v458 = vsel %vm404, %v457, 0.0
        %459 = vadd.xlane.f32.xlu0 %v458
        %v460 = vpop.xlane.xlu0 %459
        %v461 = vrcp.pop %v460
        %v462 = vmul.f32 %v457, %v461
        %v463 = vpack.c.bf16 %v462, %v462
        %465 = vrot.lane.b32.xlu0 %v400, 64
        %v466 = vpop.permute.xlu0 %465
        %v468 = vsel %vm404, %v463, 0
        %vm470 = vcmask 1043456
        %v472 = vsel %vm470, %v466, 0
        %474 = vmatprep.subr.bf16.mxu0 0
        %475 = vmatpush1.bf16.msra.mxu0 %v472
        %476 = vmatprep.subr.bf16.mxu0 0
        %477 = vmatpush1.bf16.msra.mxu0 0
        %478 = vmatprep.subr.bf16.mxu0 0
        %479 = vmatpush1.bf16.msra.mxu0 0
        %480 = vmatprep.subr.bf16.mxu0 0
        %481 = vmatpush1.bf16.msra.mxu0 0
        %482 = vmatprep.subr.bf16.mxu0 0
        %483 = vmatpush1.bf16.msra.mxu0 0
        %484 = vmatprep.subr.bf16.mxu0 0
        %485 = vmatpush1.bf16.msra.mxu0 0
        %486 = vmatprep.subr.bf16.mxu0 0
        %487 = vmatpush1.bf16.msra.mxu0 0
        %488 = vmatprep.subr.bf16.mxu0 0
        %489 = vmatpush1.bf16.msra.mxu0 0
        %490 = vmatprep.subr.bf16.mxu0 0
        %491 = vmatpush1.bf16.msra.mxu0 0
        %492 = vmatprep.subr.bf16.mxu0 0
        %493 = vmatpush1.bf16.msra.mxu0 0
        %494 = vmatprep.subr.bf16.mxu0 0
        %495 = vmatpush1.bf16.msra.mxu0 0
        %496 = vmatprep.subr.bf16.mxu0 0
        %497 = vmatpush1.bf16.msra.mxu0 0
        %498 = vmatprep.subr.bf16.mxu0 0
        %499 = vmatpush1.bf16.msra.mxu0 0
        %500 = vmatprep.subr.bf16.mxu0 0
        %501 = vmatpush1.bf16.msra.mxu0 0
        %502 = vmatprep.subr.bf16.mxu0 0
        %503 = vmatpush1.bf16.msra.mxu0 0
        %504 = vmatprep.subr.bf16.mxu0 0
        %505 = vmatpush1.bf16.msra.mxu0 0
        %506 = vmatprep.mubr.bf16.mxu0 0
        %507 = vmatmul.mubr.bf16.gmra.mrb[0].mxu0 %v468
        %v508 = vpop.f32.mrb[0].mxu0
        %v509 = vadd.f32 0.0, %v508
        %v510 = vpop.f32.mrb[0].mxu0
        %v511 = vpop.f32.mrb[0].mxu0
        %v512 = vpop.f32.mrb[0].mxu0
        %513 = vdwg.mxu0
        %514 = vst.msk [vmem:[#allocation2] sm:$0xff] %vm404, %v509
        %516 = vrot.lane.b32.xlu0 %v398, 120
        %v517 = vpop.permute.xlu0 %516
        %518 = vrot.lane.b32.xlu0 %v399, 88
        %v519 = vpop.permute.xlu0 %518
        %v521 = vsel %vm404, %v517, 0
        %v524 = vsel %vm404, %v519, 0
        %526 = vmatprep.subr.bf16.mxu0 0
        %527 = vmatpush1.bf16.xpose.msra.mxu0 %v524
        %528 = vmatprep.subr.bf16.mxu0 0
        %529 = vmatpush1.bf16.xpose.msra.mxu0 0
        %530 = vmatprep.subr.bf16.mxu0 0
        %531 = vmatpush1.bf16.xpose.msra.mxu0 0
        %532 = vmatprep.subr.bf16.mxu0 0
        %533 = vmatpush1.bf16.xpose.msra.mxu0 0
        %534 = vmatprep.subr.bf16.mxu0 0
        %535 = vmatpush1.bf16.xpose.msra.mxu0 0
        %536 = vmatprep.subr.bf16.mxu0 0
        %537 = vmatpush1.bf16.xpose.msra.mxu0 0
        %538 = vmatprep.subr.bf16.mxu0 0
        %539 = vmatpush1.bf16.xpose.msra.mxu0 0
        %540 = vmatprep.subr.bf16.mxu0 0
        %541 = vmatpush1.bf16.xpose.msra.mxu0 0
        %542 = vmatprep.subr.bf16.mxu0 0
        %543 = vmatpush1.bf16.xpose.msra.mxu0 0
        %544 = vmatprep.subr.bf16.mxu0 0
        %545 = vmatpush1.bf16.xpose.msra.mxu0 0
        %546 = vmatprep.subr.bf16.mxu0 0
        %547 = vmatpush1.bf16.xpose.msra.mxu0 0
        %548 = vmatprep.subr.bf16.mxu0 0
        %549 = vmatpush1.bf16.xpose.msra.mxu0 0
        %550 = vmatprep.subr.bf16.mxu0 0
        %551 = vmatpush1.bf16.xpose.msra.mxu0 0
        %552 = vmatprep.subr.bf16.mxu0 0
        %553 = vmatpush1.bf16.xpose.msra.mxu0 0
        %554 = vmatprep.subr.bf16.mxu0 0
        %555 = vmatpush1.bf16.xpose.msra.mxu0 0
        %556 = vmatprep.subr.bf16.mxu0 0
        %557 = vmatpush1.bf16.xpose.msra.mxu0 0
        %558 = vmatprep.mubr.bf16.mxu0 0
        %559 = vmatmul.mubr.bf16.gmra.mrb[0].mxu0 %v521
        %v560 = vpop.f32.mrb[0].mxu0
        %v561 = vadd.f32 0.0, %v560
        %v562 = vpop.f32.mrb[0].mxu0
        %v563 = vpop.f32.mrb[0].mxu0
        %v564 = vpop.f32.mrb[0].mxu0
        %565 = vdwg.mxu0
        %v566 = vsel %vm397, %v561, -1e+30
        %v567 = vsel %vm404, %v566, -inf
        %568 = vmax.xlane.f32.xlu0 %v567
        %v569 = vpop.xlane.xlu0 %568
        %v570 = vsub.f32 %v566, %v569
        %v571 = vmul.f32 %v570, 1.442695
        %v572 = vpow.pop %v571
        %v573 = vsel %vm404, %v572, 0.0
        %574 = vadd.xlane.f32.xlu0 %v573
        %v575 = vpop.xlane.xlu0 %574
        %v576 = vrcp.pop %v575
        %v577 = vmul.f32 %v572, %v576
        %v578 = vpack.c.bf16 %v577, %v577
        %579 = vrot.lane.b32.xlu0 %v400, 56
        %v580 = vpop.permute.xlu0 %579
        %v582 = vsel %vm404, %v578, 0
        %v585 = vsel %vm470, %v580, 0
        %587 = vmatprep.subr.bf16.mxu0 0
        %588 = vmatpush1.bf16.msra.mxu0 %v585
        %589 = vmatprep.subr.bf16.mxu0 0
        %590 = vmatpush1.bf16.msra.mxu0 0
        %591 = vmatprep.subr.bf16.mxu0 0
        %592 = vmatpush1.bf16.msra.mxu0 0
        %593 = vmatprep.subr.bf16.mxu0 0
        %594 = vmatpush1.bf16.msra.mxu0 0
        %595 = vmatprep.subr.bf16.mxu0 0
        %596 = vmatpush1.bf16.msra.mxu0 0
        %597 = vmatprep.subr.bf16.mxu0 0
        %598 = vmatpush1.bf16.msra.mxu0 0
        %599 = vmatprep.subr.bf16.mxu0 0
        %600 = vmatpush1.bf16.msra.mxu0 0
        %601 = vmatprep.subr.bf16.mxu0 0
        %602 = vmatpush1.bf16.msra.mxu0 0
        %603 = vmatprep.subr.bf16.mxu0 0
        %604 = vmatpush1.bf16.msra.mxu0 0
        %605 = vmatprep.subr.bf16.mxu0 0
        %606 = vmatpush1.bf16.msra.mxu0 0
        %607 = vmatprep.subr.bf16.mxu0 0
        %608 = vmatpush1.bf16.msra.mxu0 0
        %609 = vmatprep.subr.bf16.mxu0 0
        %610 = vmatpush1.bf16.msra.mxu0 0
        %611 = vmatprep.subr.bf16.mxu0 0
        %612 = vmatpush1.bf16.msra.mxu0 0
        %613 = vmatprep.subr.bf16.mxu0 0
        %614 = vmatpush1.bf16.msra.mxu0 0
        %615 = vmatprep.subr.bf16.mxu0 0
        %616 = vmatpush1.bf16.msra.mxu0 0
        %617 = vmatprep.subr.bf16.mxu0 0
        %618 = vmatpush1.bf16.msra.mxu0 0
        %619 = vmatprep.mubr.bf16.mxu0 0
        %620 = vmatmul.mubr.bf16.gmra.mrb[0].mxu0 %v582
        %v621 = vpop.f32.mrb[0].mxu0
        %v622 = vadd.f32 0.0, %v621
        %v623 = vpop.f32.mrb[0].mxu0
        %v624 = vpop.f32.mrb[0].mxu0
        %v625 = vpop.f32.mrb[0].mxu0
        %626 = vdwg.mxu0
        %628 = vrot.lane.b32.xlu0 %v622, 8
        %v629 = vpop.permute.xlu0 %628
        %vm631 = vcmask 130112
        %632 = vst.msk [vmem:[#allocation2] sm:$0xff] %vm631, %v629
        %633 = vrot.lane.b32.xlu0 %v398, 112
        %v634 = vpop.permute.xlu0 %633
        %635 = vrot.lane.b32.xlu0 %v399, 80
        %v636 = vpop.permute.xlu0 %635
        %v638 = vsel %vm404, %v634, 0
        %v641 = vsel %vm404, %v636, 0
        %643 = vmatprep.subr.bf16.mxu0 0
        %644 = vmatpush1.bf16.xpose.msra.mxu0 %v641
        %645 = vmatprep.subr.bf16.mxu0 0
        %646 = vmatpush1.bf16.xpose.msra.mxu0 0
        %647 = vmatprep.subr.bf16.mxu0 0
        %648 = vmatpush1.bf16.xpose.msra.mxu0 0
        %649 = vmatprep.subr.bf16.mxu0 0
        %650 = vmatpush1.bf16.xpose.msra.mxu0 0
        %651 = vmatprep.subr.bf16.mxu0 0
        %652 = vmatpush1.bf16.xpose.msra.mxu0 0
        %653 = vmatprep.subr.bf16.mxu0 0
        %654 = vmatpush1.bf16.xpose.msra.mxu0 0
        %655 = vmatprep.subr.bf16.mxu0 0
        %656 = vmatpush1.bf16.xpose.msra.mxu0 0
        %657 = vmatprep.subr.bf16.mxu0 0
        %658 = vmatpush1.bf16.xpose.msra.mxu0 0
        %659 = vmatprep.subr.bf16.mxu0 0
        %660 = vmatpush1.bf16.xpose.msra.mxu0 0
        %661 = vmatprep.subr.bf16.mxu0 0
        %662 = vmatpush1.bf16.xpose.msra.mxu0 0
        %663 = vmatprep.subr.bf16.mxu0 0
        %664 = vmatpush1.bf16.xpose.msra.mxu0 0
        %665 = vmatprep.subr.bf16.mxu0 0
        %666 = vmatpush1.bf16.xpose.msra.mxu0 0
        %667 = vmatprep.subr.bf16.mxu0 0
        %668 = vmatpush1.bf16.xpose.msra.mxu0 0
        %669 = vmatprep.subr.bf16.mxu0 0
        %670 = vmatpush1.bf16.xpose.msra.mxu0 0
        %671 = vmatprep.subr.bf16.mxu0 0
        %672 = vmatpush1.bf16.xpose.msra.mxu0 0
        %673 = vmatprep.subr.bf16.mxu0 0
        %674 = vmatpush1.bf16.xpose.msra.mxu0 0
        %675 = vmatprep.mubr.bf16.mxu0 0
        %676 = vmatmul.mubr.bf16.gmra.mrb[0].mxu0 %v638
        %v677 = vpop.f32.mrb[0].mxu0
        %v678 = vadd.f32 0.0, %v677
        %v679 = vpop.f32.mrb[0].mxu0
        %v680 = vpop.f32.mrb[0].mxu0
        %v681 = vpop.f32.mrb[0].mxu0
        %682 = vdwg.mxu0
        %v683 = vsel %vm397, %v678, -1e+30
        %v684 = vsel %vm404, %v683, -inf
        %685 = vmax.xlane.f32.xlu0 %v684
        %v686 = vpop.xlane.xlu0 %685
        %v687 = vsub.f32 %v683, %v686
        %v688 = vmul.f32 %v687, 1.442695
        %v689 = vpow.pop %v688
        %v690 = vsel %vm404, %v689, 0.0
        %691 = vadd.xlane.f32.xlu0 %v690
        %v692 = vpop.xlane.xlu0 %691
        %v693 = vrcp.pop %v692
        %v694 = vmul.f32 %v689, %v693
        %v695 = vpack.c.bf16 %v694, %v694
        %696 = vrot.lane.b32.xlu0 %v400, 48
        %v697 = vpop.permute.xlu0 %696
        %v699 = vsel %vm404, %v695, 0
        %v702 = vsel %vm470, %v697, 0
        %704 = vmatprep.subr.bf16.mxu0 0
        %705 = vmatpush1.bf16.msra.mxu0 %v702
        %706 = vmatprep.subr.bf16.mxu0 0
        %707 = vmatpush1.bf16.msra.mxu0 0
        %708 = vmatprep.subr.bf16.mxu0 0
        %709 = vmatpush1.bf16.msra.mxu0 0
        %710 = vmatprep.subr.bf16.mxu0 0
        %711 = vmatpush1.bf16.msra.mxu0 0
        %712 = vmatprep.subr.bf16.mxu0 0
        %713 = vmatpush1.bf16.msra.mxu0 0
        %714 = vmatprep.subr.bf16.mxu0 0
        %715 = vmatpush1.bf16.msra.mxu0 0
        %716 = vmatprep.subr.bf16.mxu0 0
        %717 = vmatpush1.bf16.msra.mxu0 0
        %718 = vmatprep.subr.bf16.mxu0 0
        %719 = vmatpush1.bf16.msra.mxu0 0
        %720 = vmatprep.subr.bf16.mxu0 0
        %721 = vmatpush1.bf16.msra.mxu0 0
        %722 = vmatprep.subr.bf16.mxu0 0
        %723 = vmatpush1.bf16.msra.mxu0 0
        %724 = vmatprep.subr.bf16.mxu0 0
        %725 = vmatpush1.bf16.msra.mxu0 0
        %726 = vmatprep.subr.bf16.mxu0 0
        %727 = vmatpush1.bf16.msra.mxu0 0
        %728 = vmatprep.subr.bf16.mxu0 0
        %729 = vmatpush1.bf16.msra.mxu0 0
        %730 = vmatprep.subr.bf16.mxu0 0
        %731 = vmatpush1.bf16.msra.mxu0 0
        %732 = vmatprep.subr.bf16.mxu0 0
        %733 = vmatpush1.bf16.msra.mxu0 0
        %734 = vmatprep.subr.bf16.mxu0 0
        %735 = vmatpush1.bf16.msra.mxu0 0
        %736 = vmatprep.mubr.bf16.mxu0 0
        %737 = vmatmul.mubr.bf16.gmra.mrb[0].mxu0 %v699
        %v738 = vpop.f32.mrb[0].mxu0
        %v739 = vadd.f32 0.0, %v738
        %v740 = vpop.f32.mrb[0].mxu0
        %v741 = vpop.f32.mrb[0].mxu0
        %v742 = vpop.f32.mrb[0].mxu0
        %743 = vdwg.mxu0
        %745 = vrot.lane.b32.xlu0 %v739, 16
        %v746 = vpop.permute.xlu0 %745
        %vm748 = vcmask 195712
        %749 = vst.msk [vmem:[#allocation2] sm:$0xff] %vm748, %v746
        %750 = vrot.lane.b32.xlu0 %v398, 104
        %v751 = vpop.permute.xlu0 %750
        %752 = vrot.lane.b32.xlu0 %v399, 72
        %v753 = vpop.permute.xlu0 %752
        %v755 = vsel %vm404, %v751, 0
        %v758 = vsel %vm404, %v753, 0
        %760 = vmatprep.subr.bf16.mxu0 0
        %761 = vmatpush1.bf16.xpose.msra.mxu0 %v758
        %762 = vmatprep.subr.bf16.mxu0 0
        %763 = vmatpush1.bf16.xpose.msra.mxu0 0
        %764 = vmatprep.subr.bf16.mxu0 0
        %765 = vmatpush1.bf16.xpose.msra.mxu0 0
        %766 = vmatprep.subr.bf16.mxu0 0
        %767 = vmatpush1.bf16.xpose.msra.mxu0 0
        %768 = vmatprep.subr.bf16.mxu0 0
        %769 = vmatpush1.bf16.xpose.msra.mxu0 0
        %770 = vmatprep.subr.bf16.mxu0 0
        %771 = vmatpush1.bf16.xpose.msra.mxu0 0
        %772 = vmatprep.subr.bf16.mxu0 0
        %773 = vmatpush1.bf16.xpose.msra.mxu0 0
        %774 = vmatprep.subr.bf16.mxu0 0
        %775 = vmatpush1.bf16.xpose.msra.mxu0 0
        %776 = vmatprep.subr.bf16.mxu0 0
        %777 = vmatpush1.bf16.xpose.msra.mxu0 0
        %778 = vmatprep.subr.bf16.mxu0 0
        %779 = vmatpush1.bf16.xpose.msra.mxu0 0
        %780 = vmatprep.subr.bf16.mxu0 0
        %781 = vmatpush1.bf16.xpose.msra.mxu0 0
        %782 = vmatprep.subr.bf16.mxu0 0
        %783 = vmatpush1.bf16.xpose.msra.mxu0 0
        %784 = vmatprep.subr.bf16.mxu0 0
        %785 = vmatpush1.bf16.xpose.msra.mxu0 0
        %786 = vmatprep.subr.bf16.mxu0 0
        %787 = vmatpush1.bf16.xpose.msra.mxu0 0
        %788 = vmatprep.subr.bf16.mxu0 0
        %789 = vmatpush1.bf16.xpose.msra.mxu0 0
        %790 = vmatprep.subr.bf16.mxu0 0
        %791 = vmatpush1.bf16.xpose.msra.mxu0 0
        %792 = vmatprep.mubr.bf16.mxu0 0
        %793 = vmatmul.mubr.bf16.gmra.mrb[0].mxu0 %v755
        %v794 = vpop.f32.mrb[0].mxu0
        %v795 = vadd.f32 0.0, %v794
        %v796 = vpop.f32.mrb[0].mxu0
        %v797 = vpop.f32.mrb[0].mxu0
        %v798 = vpop.f32.mrb[0].mxu0
        %799 = vdwg.mxu0
        %v800 = vsel %vm397, %v795, -1e+30
        %v801 = vsel %vm404, %v800, -inf
        %802 = vmax.xlane.f32.xlu0 %v801
        %v803 = vpop.xlane.xlu0 %802
        %v804 = vsub.f32 %v800, %v803
        %v805 = vmul.f32 %v804, 1.442695
        %v806 = vpow.pop %v805
        %v807 = vsel %vm404, %v806, 0.0
        %808 = vadd.xlane.f32.xlu0 %v807
        %v809 = vpop.xlane.xlu0 %808
        %v810 = vrcp.pop %v809
        %v811 = vmul.f32 %v806, %v810
        %v812 = vpack.c.bf16 %v811, %v811
        %813 = vrot.lane.b32.xlu0 %v400, 40
        %v814 = vpop.permute.xlu0 %813
        %v816 = vsel %vm404, %v812, 0
        %v819 = vsel %vm470, %v814, 0
        %821 = vmatprep.subr.bf16.mxu0 0
        %822 = vmatpush1.bf16.msra.mxu0 %v819
        %823 = vmatprep.subr.bf16.mxu0 0
        %824 = vmatpush1.bf16.msra.mxu0 0
        %825 = vmatprep.subr.bf16.mxu0 0
        %826 = vmatpush1.bf16.msra.mxu0 0
        %827 = vmatprep.subr.bf16.mxu0 0
        %828 = vmatpush1.bf16.msra.mxu0 0
        %829 = vmatprep.subr.bf16.mxu0 0
        %830 = vmatpush1.bf16.msra.mxu0 0
        %831 = vmatprep.subr.bf16.mxu0 0
        %832 = vmatpush1.bf16.msra.mxu0 0
        %833 = vmatprep.subr.bf16.mxu0 0
        %834 = vmatpush1.bf16.msra.mxu0 0
        %835 = vmatprep.subr.bf16.mxu0 0
        %836 = vmatpush1.bf16.msra.mxu0 0
        %837 = vmatprep.subr.bf16.mxu0 0
        %838 = vmatpush1.bf16.msra.mxu0 0
        %839 = vmatprep.subr.bf16.mxu0 0
        %840 = vmatpush1.bf16.msra.mxu0 0
        %841 = vmatprep.subr.bf16.mxu0 0
        %842 = vmatpush1.bf16.msra.mxu0 0
        %843 = vmatprep.subr.bf16.mxu0 0
        %844 = vmatpush1.bf16.msra.mxu0 0
        %845 = vmatprep.subr.bf16.mxu0 0
        %846 = vmatpush1.bf16.msra.mxu0 0
        %847 = vmatprep.subr.bf16.mxu0 0
        %848 = vmatpush1.bf16.msra.mxu0 0
        %849 = vmatprep.subr.bf16.mxu0 0
        %850 = vmatpush1.bf16.msra.mxu0 0
        %851 = vmatprep.subr.bf16.mxu0 0
        %852 = vmatpush1.bf16.msra.mxu0 0
        %853 = vmatprep.mubr.bf16.mxu0 0
        %854 = vmatmul.mubr.bf16.gmra.mrb[0].mxu0 %v816
        %v855 = vpop.f32.mrb[0].mxu0
        %v856 = vadd.f32 0.0, %v855
        %v857 = vpop.f32.mrb[0].mxu0
        %v858 = vpop.f32.mrb[0].mxu0
        %v859 = vpop.f32.mrb[0].mxu0
        %860 = vdwg.mxu0
        %862 = vrot.lane.b32.xlu0 %v856, 24
        %v863 = vpop.permute.xlu0 %862
        %vm865 = vcmask 261312
        %866 = vst.msk [vmem:[#allocation2] sm:$0xff] %vm865, %v863
        %v867 = vld [vmem:[#allocation2] sm:$0xff]
        %v868 = vpack.c.bf16 %v867, %v867
        %v869 = vld [vmem:[%s3] sm:$0xf]
        %v870 = vld [vmem:[%s3 + $0x4] sm:$0xf]
        %v871 = vld [vmem:[%s3 + $0x8] sm:$0xf]
        %v872 = vld [vmem:[%s3 + $0xc] sm:$0xf]
        %v873 = vlaneseq
        %v874 = vshrl.u32 %v873, 7
        %v875 = vsub.s32 0, %v874
        %v876 = vrot.slane %v280, %v875
        %v881 = vunpack.c.l.b16 %v869
        %v882 = vunpack.c.l.b16 %v870
        %v883 = vunpack.c.l.b16 %v871
        %v884 = vunpack.c.l.b16 %v872
        %v885 = vpack.c.b16 %v882, %v881
        %v886 = vpack.c.b16 %v884, %v883
        %v890 = vsel %vm285, %v868, 0
        %892 = vmatprep.subr.bf16.mxu0 0
        %893 = vmatpush1.bf16.msra.mxu0 %v885
        %894 = vmatprep.subr.bf16.mxu0 0
        %895 = vmatpush1.bf16.msra.mxu0 %v886
        %896 = vmatprep.subr.bf16.mxu0 0
        %897 = vmatpush1.bf16.msra.mxu0 0
        %898 = vmatprep.subr.bf16.mxu0 0
        %899 = vmatpush1.bf16.msra.mxu0 0
        %900 = vmatprep.subr.bf16.mxu0 0
        %901 = vmatpush1.bf16.msra.mxu0 0
        %902 = vmatprep.subr.bf16.mxu0 0
        %903 = vmatpush1.bf16.msra.mxu0 0
        %904 = vmatprep.subr.bf16.mxu0 0
        %905 = vmatpush1.bf16.msra.mxu0 0
        %906 = vmatprep.subr.bf16.mxu0 0
        %907 = vmatpush1.bf16.msra.mxu0 0
        %908 = vmatprep.subr.bf16.mxu0 0
        %909 = vmatpush1.bf16.msra.mxu0 0
        %910 = vmatprep.subr.bf16.mxu0 0
        %911 = vmatpush1.bf16.msra.mxu0 0
        %912 = vmatprep.subr.bf16.mxu0 0
        %913 = vmatpush1.bf16.msra.mxu0 0
        %914 = vmatprep.subr.bf16.mxu0 0
        %915 = vmatpush1.bf16.msra.mxu0 0
        %916 = vmatprep.subr.bf16.mxu0 0
        %917 = vmatpush1.bf16.msra.mxu0 0
        %918 = vmatprep.subr.bf16.mxu0 0
        %919 = vmatpush1.bf16.msra.mxu0 0
        %920 = vmatprep.subr.bf16.mxu0 0
        %921 = vmatpush1.bf16.msra.mxu0 0
        %922 = vmatprep.subr.bf16.mxu0 0
        %923 = vmatpush1.bf16.msra.mxu0 0
        %924 = vmatprep.mubr.bf16.mxu0 0
        %925 = vmatmul.mubr.bf16.gmra.mrb[0].mxu0 %v890
        %v926 = vpop.f32.mrb[0].mxu0
        %v927 = vadd.f32 %v876, %v926
        %v928 = vpop.f32.mrb[0].mxu0
        %v929 = vpop.f32.mrb[0].mxu0
        %v930 = vpop.f32.mrb[0].mxu0
        %931 = vdwg.mxu0
        %v932 = vadd.f32 %v275, %v927
        %v933 = vsel %vm285, %v932, 0.0
        %934 = vadd.xlane.f32.xlu0 %v933
        %v935 = vpop.xlane.xlu0 %934
        %v936 = vmul.f32 %v935, %v289
        %v937 = vsub.f32 %v932, %v936
        %v938 = vmul.f32 %v937, %v937
        %v939 = vsel %vm285, %v938, 0.0
        %940 = vadd.xlane.f32.xlu0 %v939
        %v941 = vpop.xlane.xlu0 %940
        %v942 = vmul.f32 %v941, %v289
        %v943 = vadd.f32 %v942, 1e-05
        %v944 = vrsqrt.pop %v943
        %v945 = vmul.f32 %v937, %v944
        %v946 = vlaneseq
        %v947 = vshrl.u32 %v946, 7
        %v948 = vsub.s32 0, %v947
        %v949 = vrot.slane %v278, %v948
        %v950 = vmul.f32 %v945, %v949
        %v951 = vlaneseq
        %v952 = vshrl.u32 %v951, 7
        %v953 = vsub.s32 0, %v952
        %v954 = vrot.slane %v279, %v953
        %v955 = vadd.f32 %v950, %v954
        %v956 = vpack.c.bf16 %v955, %v955
        %v957 = vld [vmem:[%s4] sm:$0xf]
        %v958 = vld [vmem:[%s4 + $0x4] sm:$0xf]
        %v959 = vld [vmem:[%s4 + $0x8] sm:$0xf]
        %v960 = vld [vmem:[%s4 + $0xc] sm:$0xf]
        %v961 = vld [vmem:[%s5] sm:$0x1]
        %v963 = vlaneseq
        %v964 = vshrl.u32 %v963, 7
        %v965 = vsub.s32 0, %v964
        %v966 = vrot.slane %v961, %v965
        %v972 = vunpack.c.l.b16 %v957
        %v973 = vunpack.c.l.b16 %v958
        %v974 = vunpack.c.l.b16 %v959
        %v975 = vunpack.c.l.b16 %v960
        %v976 = vpack.c.b16 %v973, %v972
        %v977 = vpack.c.b16 %v975, %v974
        %v981 = vsel %vm285, %v956, 0
        %983 = vmatprep.subr.bf16.mxu0 0
        %984 = vmatpush1.bf16.msra.mxu0 %v976
        %985 = vmatprep.subr.bf16.mxu0 0
        %986 = vmatpush1.bf16.msra.mxu0 %v977
        %987 = vmatprep.subr.bf16.mxu0 0
        %988 = vmatpush1.bf16.msra.mxu0 0
        %989 = vmatprep.subr.bf16.mxu0 0
        %990 = vmatpush1.bf16.msra.mxu0 0
        %991 = vmatprep.subr.bf16.mxu0 0
        %992 = vmatpush1.bf16.msra.mxu0 0
        %993 = vmatprep.subr.bf16.mxu0 0
        %994 = vmatpush1.bf16.msra.mxu0 0
        %995 = vmatprep.subr.bf16.mxu0 0
        %996 = vmatpush1.bf16.msra.mxu0 0
        %997 = vmatprep.subr.bf16.mxu0 0
        %998 = vmatpush1.bf16.msra.mxu0 0
        %999 = vmatprep.subr.bf16.mxu0 0
        %1000 = vmatpush1.bf16.msra.mxu0 0
        %1001 = vmatprep.subr.bf16.mxu0 0
        %1002 = vmatpush1.bf16.msra.mxu0 0
        %1003 = vmatprep.subr.bf16.mxu0 0
        %1004 = vmatpush1.bf16.msra.mxu0 0
        %1005 = vmatprep.subr.bf16.mxu0 0
        %1006 = vmatpush1.bf16.msra.mxu0 0
        %1007 = vmatprep.subr.bf16.mxu0 0
        %1008 = vmatpush1.bf16.msra.mxu0 0
        %1009 = vmatprep.subr.bf16.mxu0 0
        %1010 = vmatpush1.bf16.msra.mxu0 0
        %1011 = vmatprep.subr.bf16.mxu0 0
        %1012 = vmatpush1.bf16.msra.mxu0 0
        %1013 = vmatprep.subr.bf16.mxu0 0
        %1014 = vmatpush1.bf16.msra.mxu0 0
        %1015 = vmatprep.mubr.bf16.mxu0 0
        %1016 = vmatmul.mubr.bf16.gmra.mrb[0].mxu0 %v981
        %v1017 = vpop.f32.mrb[0].mxu0
        %v1018 = vadd.f32 %v966, %v1017
        %v1019 = vpop.f32.mrb[0].mxu0
        %v1020 = vpop.f32.mrb[0].mxu0
        %v1021 = vpop.f32.mrb[0].mxu0
        %1022 = vdwg.mxu0
        %v1023 = vmul.f32 %v1018, 0.5
        %v1024 = vmul.f32 %v1018, 0.044715
        %v1025 = vmul.f32 %v1024, %v1018
        %v1026 = vmul.f32 %v1025, %v1018
        %v1027 = vadd.f32 %v1018, %v1026
        %v1028 = vmul.f32 %v1027, 0.7978846
        %v1029 = vtanh.pop %v1028
        %v1030 = vadd.f32 %v1029, 1.0
        %v1031 = vmul.f32 %v1023, %v1030
        %v1032 = vpack.c.bf16 %v1031, %v1031
        %v1033 = vld [vmem:[%s6] sm:$0xf]
        %v1034 = vld [vmem:[%s6 + $0x4] sm:$0xf]
        %v1035 = vld [vmem:[%s6 + $0x8] sm:$0xf]
        %v1036 = vld [vmem:[%s6 + $0xc] sm:$0xf]
        %v1037 = vld [vmem:[%s6 + $0x10] sm:$0xf]
        %v1038 = vld [vmem:[%s6 + $0x14] sm:$0xf]
        %v1039 = vld [vmem:[%s6 + $0x18] sm:$0xf]
        %v1040 = vld [vmem:[%s6 + $0x1c] sm:$0xf]
        %v1041 = vld [vmem:[%s6 + $0x20] sm:$0xf]
        %v1042 = vld [vmem:[%s6 + $0x24] sm:$0xf]
        %v1043 = vld [vmem:[%s6 + $0x28] sm:$0xf]
        %v1044 = vld [vmem:[%s6 + $0x2c] sm:$0xf]
        %v1045 = vld [vmem:[%s6 + $0x30] sm:$0xf]
        %v1046 = vld [vmem:[%s6 + $0x34] sm:$0xf]
        %v1047 = vld [vmem:[%s6 + $0x38] sm:$0xf]
        %v1048 = vld [vmem:[%s6 + $0x3c] sm:$0xf]
        %v1049 = vlaneseq
        %v1050 = vshrl.u32 %v1049, 7
        %v1051 = vsub.s32 0, %v1050
        %v1052 = vrot.slane %v281, %v1051
        %v1069 = vunpack.c.l.b16 %v1033
        %v1070 = vunpack.c.l.b16 %v1034
        %v1071 = vunpack.c.l.b16 %v1035
        %v1072 = vunpack.c.l.b16 %v1036
        %v1073 = vunpack.c.l.b16 %v1037
        %v1074 = vunpack.c.l.b16 %v1038
        %v1075 = vunpack.c.l.b16 %v1039
        %v1076 = vunpack.c.l.b16 %v1040
        %v1077 = vunpack.c.l.b16 %v1041
        %v1078 = vunpack.c.l.b16 %v1042
        %v1079 = vunpack.c.l.b16 %v1043
        %v1080 = vunpack.c.l.b16 %v1044
        %v1081 = vunpack.c.l.b16 %v1045
        %v1082 = vunpack.c.l.b16 %v1046
        %v1083 = vunpack.c.l.b16 %v1047
        %v1084 = vunpack.c.l.b16 %v1048
        %v1085 = vpack.c.b16 %v1070, %v1069
        %v1086 = vpack.c.b16 %v1072, %v1071
        %v1087 = vpack.c.b16 %v1074, %v1073
        %v1088 = vpack.c.b16 %v1076, %v1075
        %v1089 = vpack.c.b16 %v1078, %v1077
        %v1090 = vpack.c.b16 %v1080, %v1079
        %v1091 = vpack.c.b16 %v1082, %v1081
        %v1092 = vpack.c.b16 %v1084, %v1083
        %1101 = vmatprep.subr.bf16.mxu0 0
        %1102 = vmatpush1.bf16.msra.mxu0 %v1085
        %1103 = vmatprep.subr.bf16.mxu0 0
        %1104 = vmatpush1.bf16.msra.mxu0 %v1086
        %1105 = vmatprep.subr.bf16.mxu0 0
        %1106 = vmatpush1.bf16.msra.mxu0 %v1087
        %1107 = vmatprep.subr.bf16.mxu0 0
        %1108 = vmatpush1.bf16.msra.mxu0 %v1088
        %1109 = vmatprep.subr.bf16.mxu0 0
        %1110 = vmatpush1.bf16.msra.mxu0 %v1089
        %1111 = vmatprep.subr.bf16.mxu0 0
        %1112 = vmatpush1.bf16.msra.mxu0 %v1090
        %1113 = vmatprep.subr.bf16.mxu0 0
        %1114 = vmatpush1.bf16.msra.mxu0 %v1091
        %1115 = vmatprep.subr.bf16.mxu0 0
        %1116 = vmatpush1.bf16.msra.mxu0 %v1092
        %1117 = vmatprep.subr.bf16.mxu0 0
        %1118 = vmatpush1.bf16.msra.mxu0 0
        %1119 = vmatprep.subr.bf16.mxu0 0
        %1120 = vmatpush1.bf16.msra.mxu0 0
        %1121 = vmatprep.subr.bf16.mxu0 0
        %1122 = vmatpush1.bf16.msra.mxu0 0
        %1123 = vmatprep.subr.bf16.mxu0 0
        %1124 = vmatpush1.bf16.msra.mxu0 0
        %1125 = vmatprep.subr.bf16.mxu0 0
        %1126 = vmatpush1.bf16.msra.mxu0 0
        %1127 = vmatprep.subr.bf16.mxu0 0
        %1128 = vmatpush1.bf16.msra.mxu0 0
        %1129 = vmatprep.subr.bf16.mxu0 0
        %1130 = vmatpush1.bf16.msra.mxu0 0
        %1131 = vmatprep.subr.bf16.mxu0 0
        %1132 = vmatpush1.bf16.msra.mxu0 0
        %1133 = vmatprep.mubr.bf16.mxu0 0
        %1134 = vmatmul.mubr.bf16.gmra.mrb[0].mxu0 %v1032
        %v1135 = vpop.f32.mrb[0].mxu0
        %v1136 = vadd.f32 %v1052, %v1135
        %v1137 = vpop.f32.mrb[0].mxu0
        %v1138 = vpop.f32.mrb[0].mxu0
        %v1139 = vpop.f32.mrb[0].mxu0
        %1140 = vdwg.mxu0
        %v1141 = vadd.f32 %v932, %v1136
        %1142 = vst.msk [vmem:[%s269] sm:$0xff] %vm285, %v1141
        %s1143 = sand.u32 %s181, 1
        %s1144 = scalar_lea.sflag [#allocation4], %s1143
        %s1145 = sand.u32 %s181, 1
        %s1146 = smul.addr %s1145, 8
        %s1147 = scalar_lea.vmem [#allocation3], %s1146
        // Predicated region
        $region49: #{gpt_block_forward.1} parent=47 // pred_check
          %p1148 = pneg %p191
        $region50: #{gpt_block_forward.1} parent=47 // pred_check_branch
          %1150 = sbr.rel (%p1148) target = $region52
        $region51: #{gpt_block_forward.1} parent=47 // pred_region
          %s1152 = ssub.s32 128, 128
          %1153 = vsyncadd %s1144, %s1152
          %s1154 = smul.addr %s21, 128
          %s1155 = scalar_lea.hbm %s7, %s1154
          %s1157 = sshll.u32 %s1147, 4
          %s1158 = int_to_ptr.vmem [resolvable:$true] %s1157
          %1160 = dma.vmem_to_hbm [thread:$0]  %s1158, 128, %s1155, %s1144
        $region52: #{gpt_block_forward.1} parent=47 // pred_fallthru
          _
      $region48: #{gpt_block_forward.1} parent=5 // pred_fallthru
        _
      %p1161 = scmp.le.s32.totalorder 2, %s16
      // Predicated region
      $region53: #{gpt_block_forward.1} parent=5 // pred_check
        %p1162 = pneg %p1161
      $region54: #{gpt_block_forward.1} parent=5 // pred_check_branch
        %1164 = sbr.rel (%p1162) target = $region56
      $region55: #{gpt_block_forward.1} parent=5 // pred_region
        %s1165 = ssub.s32 %s16, 2
        // Predicated region
        $region57: #{gpt_block_forward.1} parent=55 // pred_check
          %p1166 = pneg %p197
        $region58: #{gpt_block_forward.1} parent=55 // pred_check_branch
          %1168 = sbr.rel (%p1166) target = $region60
        $region59: #{gpt_block_forward.1} parent=55 // pred_region
          %s1169 = sand.u32 %s182, 1
          %s1170 = scalar_lea.sflag [#allocation4], %s1169
          %s1171 = sand.u32 %s182, 1
          %s1172 = smul.addr %s1171, 8
          %s1173 = scalar_lea.vmem [#allocation3], %s1172
          %1174 = dma.done %s1170, 128
        $region60: #{gpt_block_forward.1} parent=55 // pred_fallthru
          _
      $region56: #{gpt_block_forward.1} parent=5 // pred_fallthru
        _
    $region6: #{gpt_block_forward.1} parent=1 // loop_footer
      %s20 = sadd.s32 1, %s16
    $region7: #{gpt_block_forward.1} parent=1 // loop_footer_branch
      %15 = sbr.rel target = $region3
    $region8: #{gpt_block_forward.1} parent=1 // loop_exit
      _
    %1175 = vsyncpa [#allocation4], 1
    %s1176 = scalar_lea.sflag [#allocation4], 1
    %1177 = vsyncpa %s1176, 1

</llo_original>
